<compile_context>
chip_gen: v5e
topology: v5e:2x2
jax: 0.10.0
libtpu: 0.0.40
codegen_flags: <defaults>
</compile_context>

<pallas_src>
import jax
import jax.numpy as jnp
import numpy as np
from jax.experimental import pallas as pl
from jax.experimental.pallas import tpu as pltpu


def _round_up(x, m):
    return (x + m - 1) // m * m


def _build_scatter(H1, W1, H2, W2, pad_t, pad_l):
    """Constant 0/1 scatter matrices: (tap, input pixel) -> output pixel.

    S[tap, h*W2 + w, y*W1 + x] = 1 with y = pad_t + 2h + kh, x = pad_l + 2w + kw
    and tap = kh*2 + kw.  Out-of-range (cropped) targets and pure-pad output
    positions simply have no 1 anywhere, so the scatter matmul writes zeros
    there -- exactly F.pad semantics (including negative pads).
    """
    P = H2 * W2
    scat = np.zeros((4, P, H1 * W1), dtype=np.float32)
    for kh in range(2):
        for kw in range(2):
            tap = kh * 2 + kw
            for h in range(H2):
                y = pad_t + 2 * h + kh
                if y < 0 or y >= H1:
                    continue
                for w in range(W2):
                    x = pad_l + 2 * w + kw
                    if x < 0 or x >= W1:
                        continue
                    scat[tap, h * W2 + w, y * W1 + x] = 1.0
    return scat


def _make_up_kernel(*, B, cout, cpad):
    """Fused: transposed conv 2x2/s2 + pad/crop + channel concat."""

    def kernel(w_ref, b_ref, s_ref, x2_ref, x1_ref, o_ref):
        # B is a small trace-time constant -> static unroll is fine.
        for bi in range(B):
            # All four (kh, kw) taps in one channel matmul:
            #   r[tap*cpad + co, p] = sum_ci W[ci,co,kh,kw] * x2[ci,p] + bias[co]
            r = jnp.dot(w_ref[...], x2_ref[bi],
                        preferred_element_type=jnp.float32) + b_ref[...]

            # Full-plane scatter: one constant 0/1 matmul per tap; encodes the
            # stride-2 placement and the spatial pad/crop.  HIGHEST precision
            # keeps this "copy through the MXU" exact for f32.
            acc = None
            for tap in range(4):
                r_tap = r[tap * cpad:(tap + 1) * cpad, :]   # 8-aligned view
                d = jnp.dot(r_tap, s_ref[tap],
                            precision=jax.lax.Precision.HIGHEST,
                            preferred_element_type=jnp.float32)
                acc = d if acc is None else acc + d

            # Single lane-dense (H1*W1-wide) store of the conv channels;
            # pad/crop columns are already the correct zeros.
            o_ref[bi, 0:cout, :] = acc[0:cout, :].astype(o_ref.dtype)
            # Skip-connection concat: lane-dense copy.
            o_ref[bi, cout:, :] = x1_ref[bi].astype(o_ref.dtype)

    return kernel


def up_forward(x1, x2, weight, bias):
    """Equivalent of Up.forward(x1, x2) -- NCHW in, NCHW out."""
    N, Cin, H2, W2 = x2.shape
    N1, C1, H1, W1 = x1.shape
    assert N == N1, "batch mismatch"
    assert weight.shape[0] == Cin and weight.shape[2:] == (2, 2)
    Cout = weight.shape[1]
    Ctot = Cout + C1
    out_dtype = x1.dtype

    P = H2 * W2
    HW = H1 * W1

    # F.pad offsets (negative -> crop), static from shapes.
    pad_t = (H1 - 2 * H2) // 2
    pad_l = (W1 - 2 * W2) // 2

    # ----- constants ------------------------------------------------------
    Cpad = _round_up(Cout, 8)            # sublane-align per-tap row groups
    # Weight rows ordered (tap, co), tap = kh*2 + kw, co padded to Cpad.
    w_t = jnp.transpose(weight, (2, 3, 1, 0)).astype(jnp.float32)  # (2,2,Co,Ci)
    w_t = jnp.pad(w_t, ((0, 0), (0, 0), (0, Cpad - Cout), (0, 0)))
    w_mat = w_t.reshape(4 * Cpad, Cin)
    # Bias column with the SAME (tap, co) ordering (pad rows are 0).
    b_pad = jnp.pad(bias.astype(jnp.float32), (0, Cpad - Cout))
    bias4 = jnp.tile(b_pad, 4).reshape(4 * Cpad, 1)
    # Constant 0/1 scatter matrices, built at trace time with numpy.
    scat = jnp.asarray(_build_scatter(H1, W1, H2, W2, pad_t, pad_l))

    # ----- pure reshapes (no HBM transposes) --------------------------------
    x2r = x2.reshape(N, Cin, P)
    x1r = x1.reshape(N, C1, HW)

    # ----- batch blocking: amortize the ~0.35us/step overhead ---------------
    itemsize = 4
    per_sample = (Cin * P + C1 * HW + Ctot * HW) * itemsize
    budget = 24 * 1024 * 1024                # double-buffered activation budget
    max_b = max(1, budget // (2 * per_sample))
    B = 1
    for cand in range(1, N + 1):
        if N % cand == 0 and cand <= max_b and N // cand >= 2:
            B = cand                          # keep >= 2 grid steps (megacore)
    grid = (N // B,)

    const_bytes = (w_mat.size + bias4.size + scat.size) * itemsize
    blk_bytes = B * per_sample
    vmem_limit = int(min(max(2.5 * (blk_bytes + const_bytes),
                             32 * 1024 * 1024),
                         56 * 1024 * 1024))

    kernel = _make_up_kernel(B=B, cout=Cout, cpad=Cpad)

    out = pl.pallas_call(
        kernel,
        out_shape=jax.ShapeDtypeStruct((N, Ctot, HW), out_dtype),
        grid_spec=pltpu.PrefetchScalarGridSpec(
            num_scalar_prefetch=0,
            grid=grid,
            in_specs=[
                pl.BlockSpec((4 * Cpad, Cin), lambda n: (0, 0)),    # weights
                pl.BlockSpec((4 * Cpad, 1), lambda n: (0, 0)),      # bias
                pl.BlockSpec((4, P, HW), lambda n: (0, 0, 0)),      # scatter
                pl.BlockSpec((B, Cin, P), lambda n: (n, 0, 0)),     # x2
                pl.BlockSpec((B, C1, HW), lambda n: (n, 0, 0)),     # x1
            ],
            out_specs=pl.BlockSpec((B, Ctot, HW), lambda n: (n, 0, 0)),
        ),
        compiler_params=pltpu.CompilerParams(
            dimension_semantics=("parallel",),       # batch across TCs (v7x)
            vmem_limit_bytes=vmem_limit,
        ),
    )(w_mat, bias4, scat, x2r, x1r)

    # Free reshape back to NCHW.
    return out.reshape(N, Ctot, H1, W1)


def _ref_up(x1, x2, weight, bias):
    """Pure-JAX reference implementing the ConvTranspose2d scatter directly."""
    N, Cin, H, W = x2.shape
    Cout = weight.shape[1]
    up = jnp.zeros((N, Cout, 2 * H, 2 * W), jnp.float32)
    for kh in range(2):
        for kw in range(2):
            contrib = jnp.einsum('nchw,cd->ndhw', x2, weight[:, :, kh, kw])
            up = up.at[:, :, kh::2, kw::2].set(contrib)
    up = up + bias[None, :, None, None]
    diffY = x1.shape[2] - up.shape[2]
    diffX = x1.shape[3] - up.shape[3]
    # lax.pad supports negative edge padding (= crop), matching F.pad.
    up = jax.lax.pad(up, jnp.float32(0),
                     ((0, 0, 0), (0, 0, 0),
                      (diffY // 2, diffY - diffY // 2, 0),
                      (diffX // 2, diffX - diffX // 2, 0)))
    return jnp.concatenate([up, x1], axis=1)


if __name__ == "__main__":
    key = jax.random.PRNGKey(0)
    k_w, k_b, k_x1, k_x2, k_x1b, k_x1c = jax.random.split(key, 6)

    in_ch, out_ch = 4, 4
    N = 2

    # Deterministic synthetic parameters (shapes match nn.ConvTranspose2d).
    weight = 0.1 * jax.random.normal(k_w, (in_ch, out_ch, 2, 2), dtype=jnp.float32)
    bias = 0.1 * jax.random.normal(k_b, (out_ch,), dtype=jnp.float32)

    # x2 is the low-resolution feature map (upsampled), x1 the skip connection.
    x2 = jax.random.normal(k_x2, (N, in_ch, 7, 7), dtype=jnp.float32)

    up = jax.jit(up_forward)

    # Case 1: canonical even pad (14 -> 16, diff = 2).
    x1 = jax.random.normal(k_x1, (N, in_ch, 16, 16), dtype=jnp.float32)
    out = jax.block_until_ready(up(x1, x2, weight, bias))
    ref = _ref_up(x1, x2, weight, bias)
    assert out.shape == (N, out_ch + in_ch, 16, 16), out.shape
    assert jnp.allclose(out, ref, atol=1e-5, rtol=1e-5), "case1 mismatch"

    # Case 2: odd / asymmetric pad (14 -> 17, diff = 3 -> pad (1, 2)).
    x1b = jax.random.normal(k_x1b, (N, in_ch, 17, 17), dtype=jnp.float32)
    outb = jax.block_until_ready(up(x1b, x2, weight, bias))
    refb = _ref_up(x1b, x2, weight, bias)
    assert outb.shape == (N, out_ch + in_ch, 17, 17), outb.shape
    assert jnp.allclose(outb, refb, atol=1e-5, rtol=1e-5), "case2 mismatch"

    # Case 3: negative pad / crop (14 -> 12, diff = -2 -> crop 1 each side).
    x1c = jax.random.normal(k_x1c, (N, in_ch, 12, 12), dtype=jnp.float32)
    outc = jax.block_until_ready(up(x1c, x2, weight, bias))
    refc = _ref_up(x1c, x2, weight, bias)
    assert outc.shape == (N, out_ch + in_ch, 12, 12), outc.shape
    assert jnp.allclose(outc, refc, atol=1e-5, rtol=1e-5), "case3 mismatch"

    print("KERNEL_OK")
</pallas_src>

<mosaic_0001>
module attributes {stable_mosaic.version = 11 : i64} {
  func.func @kernel(%arg0: i32, %arg1: memref<32x4xf32, #tpu.memory_space<vmem>>, %arg2: memref<32x1xf32, #tpu.memory_space<vmem>>, %arg3: memref<4x49x256xf32, #tpu.memory_space<vmem>>, %arg4: memref<1x4x49xf32, #tpu.memory_space<vmem>>, %arg5: memref<1x4x256xf32, #tpu.memory_space<vmem>>, %arg6: memref<1x8x256xf32, #tpu.memory_space<vmem>>) attributes {dimension_semantics = [#tpu.dimension_semantics<parallel>], iteration_bounds = array<i64: 2>, scalar_prefetch = 0 : i64, scratch_operands = 0 : i64, tpu.core_type = #tpu.core_type<tc>, window_params = [{pipeline_mode = #tpu.pipeline_mode<synchronous>, transform_indices = @transform_0, window_bounds = array<i64: 32, 4>}, {pipeline_mode = #tpu.pipeline_mode<synchronous>, transform_indices = @transform_1, window_bounds = array<i64: 32, 1>}, {pipeline_mode = #tpu.pipeline_mode<synchronous>, transform_indices = @transform_2, window_bounds = array<i64: 4, 49, 256>}, {transform_indices = @transform_3, window_bounds = array<i64: 1, 4, 49>}, {transform_indices = @transform_4, window_bounds = array<i64: 1, 4, 256>}, {transform_indices = @transform_5, window_bounds = array<i64: 1, 8, 256>}]} {
    %c0 = arith.constant 0 : index
    %c0_0 = arith.constant 0 : index
    %0 = vector.load %arg1[%c0, %c0_0] : memref<32x4xf32, #tpu.memory_space<vmem>>, vector<32x4xf32>
    %c0_1 = arith.constant 0 : index
    %c0_2 = arith.constant 0 : index
    %c0_3 = arith.constant 0 : index
    %1 = vector.load %arg4[%c0_1, %c0_2, %c0_3] : memref<1x4x49xf32, #tpu.memory_space<vmem>>, vector<1x4x49xf32>
    %2 = vector.shape_cast %1 : vector<1x4x49xf32> to vector<4x49xf32>
    %cst = arith.constant dense<0.000000e+00> : vector<32x49xf32>
    %3 = tpu.matmul %0, %2, %cst {dimension_numbers = #tpu.dot_dimension_numbers<[1], [0], [0], [1], [0, 0, 1, 1], [], []>} : vector<32x4xf32>, vector<4x49xf32>, vector<32x49xf32> -> vector<32x49xf32>
    %c0_4 = arith.constant 0 : index
    %c0_5 = arith.constant 0 : index
    %4 = vector.load %arg2[%c0_4, %c0_5] : memref<32x1xf32, #tpu.memory_space<vmem>>, vector<32x1xf32>
    %5 = vector.broadcast %4 : vector<32x1xf32> to vector<32x49xf32>
    %6 = arith.addf %3, %5 : vector<32x49xf32>
    %7 = vector.extract_strided_slice %6 {offsets = [0, 0], sizes = [8, 49], strides = [1, 1]} : vector<32x49xf32> to vector<8x49xf32>
    %c0_6 = arith.constant 0 : index
    %c0_7 = arith.constant 0 : index
    %c0_8 = arith.constant 0 : index
    %8 = vector.load %arg3[%c0_6, %c0_7, %c0_8] : memref<4x49x256xf32, #tpu.memory_space<vmem>>, vector<1x49x256xf32>
    %9 = vector.shape_cast %8 : vector<1x49x256xf32> to vector<49x256xf32>
    %cst_9 = arith.constant dense<0.000000e+00> : vector<8x256xf32>
    %10 = tpu.matmul %7, %9, %cst_9 {dimension_numbers = #tpu.dot_dimension_numbers<[1], [0], [0], [1], [0, 0, 1, 1], [], []>, precision = #tpu.contract_precision<fp32>} : vector<8x49xf32>, vector<49x256xf32>, vector<8x256xf32> -> vector<8x256xf32>
    %11 = vector.extract_strided_slice %6 {offsets = [8, 0], sizes = [8, 49], strides = [1, 1]} : vector<32x49xf32> to vector<8x49xf32>
    %c1 = arith.constant 1 : index
    %c0_10 = arith.constant 0 : index
    %c0_11 = arith.constant 0 : index
    %12 = vector.load %arg3[%c1, %c0_10, %c0_11] : memref<4x49x256xf32, #tpu.memory_space<vmem>>, vector<1x49x256xf32>
    %13 = vector.shape_cast %12 : vector<1x49x256xf32> to vector<49x256xf32>
    %cst_12 = arith.constant dense<0.000000e+00> : vector<8x256xf32>
    %14 = tpu.matmul %11, %13, %cst_12 {dimension_numbers = #tpu.dot_dimension_numbers<[1], [0], [0], [1], [0, 0, 1, 1], [], []>, precision = #tpu.contract_precision<fp32>} : vector<8x49xf32>, vector<49x256xf32>, vector<8x256xf32> -> vector<8x256xf32>
    %15 = arith.addf %10, %14 : vector<8x256xf32>
    %16 = vector.extract_strided_slice %6 {offsets = [16, 0], sizes = [8, 49], strides = [1, 1]} : vector<32x49xf32> to vector<8x49xf32>
    %c2 = arith.constant 2 : index
    %c0_13 = arith.constant 0 : index
    %c0_14 = arith.constant 0 : index
    %17 = vector.load %arg3[%c2, %c0_13, %c0_14] : memref<4x49x256xf32, #tpu.memory_space<vmem>>, vector<1x49x256xf32>
    %18 = vector.shape_cast %17 : vector<1x49x256xf32> to vector<49x256xf32>
    %cst_15 = arith.constant dense<0.000000e+00> : vector<8x256xf32>
    %19 = tpu.matmul %16, %18, %cst_15 {dimension_numbers = #tpu.dot_dimension_numbers<[1], [0], [0], [1], [0, 0, 1, 1], [], []>, precision = #tpu.contract_precision<fp32>} : vector<8x49xf32>, vector<49x256xf32>, vector<8x256xf32> -> vector<8x256xf32>
    %20 = arith.addf %15, %19 : vector<8x256xf32>
    %21 = vector.extract_strided_slice %6 {offsets = [24, 0], sizes = [8, 49], strides = [1, 1]} : vector<32x49xf32> to vector<8x49xf32>
    %c3 = arith.constant 3 : index
    %c0_16 = arith.constant 0 : index
    %c0_17 = arith.constant 0 : index
    %22 = vector.load %arg3[%c3, %c0_16, %c0_17] : memref<4x49x256xf32, #tpu.memory_space<vmem>>, vector<1x49x256xf32>
    %23 = vector.shape_cast %22 : vector<1x49x256xf32> to vector<49x256xf32>
    %cst_18 = arith.constant dense<0.000000e+00> : vector<8x256xf32>
    %24 = tpu.matmul %21, %23, %cst_18 {dimension_numbers = #tpu.dot_dimension_numbers<[1], [0], [0], [1], [0, 0, 1, 1], [], []>, precision = #tpu.contract_precision<fp32>} : vector<8x49xf32>, vector<49x256xf32>, vector<8x256xf32> -> vector<8x256xf32>
    %25 = arith.addf %20, %24 : vector<8x256xf32>
    %26 = vector.extract_strided_slice %25 {offsets = [0, 0], sizes = [4, 256], strides = [1, 1]} : vector<8x256xf32> to vector<4x256xf32>
    %c0_19 = arith.constant 0 : index
    %c0_20 = arith.constant 0 : index
    %c0_21 = arith.constant 0 : index
    %27 = vector.load %arg6[%c0_19, %c0_20, %c0_21] : memref<1x8x256xf32, #tpu.memory_space<vmem>>, vector<1x4x256xf32>
    %28 = vector.shape_cast %27 : vector<1x4x256xf32> to vector<4x256xf32>
    %29 = vector.shape_cast %26 : vector<4x256xf32> to vector<1x4x256xf32>
    tpu.vector_store %arg6[%c0_19, %c0_20, %c0_21], %29 {strides = array<i32>} : memref<1x8x256xf32, #tpu.memory_space<vmem>>, vector<1x4x256xf32>,
    %c0_22 = arith.constant 0 : index
    %c0_23 = arith.constant 0 : index
    %c0_24 = arith.constant 0 : index
    %30 = vector.load %arg5[%c0_22, %c0_23, %c0_24] : memref<1x4x256xf32, #tpu.memory_space<vmem>>, vector<1x4x256xf32>
    %31 = vector.shape_cast %30 : vector<1x4x256xf32> to vector<4x256xf32>
    %c0_25 = arith.constant 0 : index
    %c4 = arith.constant 4 : index
    %c0_26 = arith.constant 0 : index
    %32 = vector.load %arg6[%c0_25, %c4, %c0_26] : memref<1x8x256xf32, #tpu.memory_space<vmem>>, vector<1x4x256xf32>
    %33 = vector.shape_cast %32 : vector<1x4x256xf32> to vector<4x256xf32>
    %34 = vector.shape_cast %31 : vector<4x256xf32> to vector<1x4x256xf32>
    tpu.vector_store %arg6[%c0_25, %c4, %c0_26], %34 {strides = array<i32>} : memref<1x8x256xf32, #tpu.memory_space<vmem>>, vector<1x4x256xf32>,
    return
  }
  func.func @transform_0(%arg0: i32) -> (i32, i32) {
    %c0_i32 = arith.constant 0 : i32
    %c0_i32_0 = arith.constant 0 : i32
    %c0_i32_1 = arith.constant 0 : i32
    return %c0_i32, %c0_i32_0 : i32, i32
  }
  func.func @transform_1(%arg0: i32) -> (i32, i32) {
    %c0_i32 = arith.constant 0 : i32
    %c0_i32_0 = arith.constant 0 : i32
    %c0_i32_1 = arith.constant 0 : i32
    return %c0_i32, %c0_i32_0 : i32, i32
  }
  func.func @transform_2(%arg0: i32) -> (i32, i32, i32) {
    %c0_i32 = arith.constant 0 : i32
    %c0_i32_0 = arith.constant 0 : i32
    %c0_i32_1 = arith.constant 0 : i32
    %c0_i32_2 = arith.constant 0 : i32
    return %c0_i32, %c0_i32_0, %c0_i32_1 : i32, i32, i32
  }
  func.func @transform_3(%arg0: i32) -> (i32, i32, i32) {
    %c0_i32 = arith.constant 0 : i32
    %c0_i32_0 = arith.constant 0 : i32
    %c0_i32_1 = arith.constant 0 : i32
    return %arg0, %c0_i32, %c0_i32_0 : i32, i32, i32
  }
  func.func @transform_4(%arg0: i32) -> (i32, i32, i32) {
    %c0_i32 = arith.constant 0 : i32
    %c0_i32_0 = arith.constant 0 : i32
    %c0_i32_1 = arith.constant 0 : i32
    return %arg0, %c0_i32, %c0_i32_0 : i32, i32, i32
  }
  func.func @transform_5(%arg0: i32) -> (i32, i32, i32) {
    %c0_i32 = arith.constant 0 : i32
    %c0_i32_0 = arith.constant 0 : i32
    %c0_i32_1 = arith.constant 0 : i32
    return %arg0, %c0_i32, %c0_i32_0 : i32, i32, i32
  }
}

</mosaic_0001>

<llo_original>
// kernel: tile.8
$region0: #{tile.8}
  #allocation0 [shape = 's32[1]{0}', space=sflag, size = 0x4, scoped, tag = 'scoped memory for tile.8']
  %s0 = inlined_call_operand.vmem [shape: f32[8], index: 0, kind: input, shape index: {}]
  %s1 = inlined_call_operand.vmem [shape: f32[4,8], index: 1, kind: output, shape index: {}]
  // Predicated region
  $region2: #{tile.8} parent=0 // pred_check
    _
  $region3: #{tile.8} parent=0 // pred_check_branch
    %3 = sbr.rel (0) target = $region5
  $region4: #{tile.8} parent=0 // pred_region
    _
  $region5: #{tile.8} parent=0 // pred_fallthru
    _
  %v4 = vld [vmem:[%s0] ss:$0 sm:$0xff]
  %5 = vst [vmem:[%s1] sm:$0xf] %v4

// kernel: tile.0
$region0: #{tile.0}
  %s0 = inlined_call_operand.vmem [shape: f32[4,8], index: 0, kind: input, shape index: {}]
  %s1 = inlined_call_operand.vmem [shape: f32[32,1], index: 1, kind: output, shape index: {}]
  $region1: #{tile.0} parent=0
    #allocation0 [shape = 'u8[4096]{0}', space=vmem, size = 0x1000, scoped, tag = 'scoped mem for input reshape']
    %s3 = ssub.s32 16, 1
    %v4 = vld [vmem:[%s0] sm:%s3]
    %5 = vst [vmem:[#allocation0] sm:%s3] %v4
    %v6 = vld [vmem:[#allocation0] sm:$0xf]
    %vm7 = vcmask 7168
    %8 = vst.msk [vmem:[%s1] ss:$8 sm:$0xf] %vm7, %v6
    %v9 = vld [vmem:[#allocation0] sm:$0xf]
    %10 = vrot.lane.b32.xlu0 %v9, 127
    %v11 = vpop.permute.xlu0 %10
    %vm12 = vcmask 7168
    %s13 = scalar_lea.vmem %s1, 1
    %14 = vst.msk [vmem:[%s13] ss:$8 sm:$0xf] %vm12, %v11
    %v15 = vld [vmem:[#allocation0] sm:$0xf]
    %16 = vrot.lane.b32.xlu0 %v15, 126
    %v17 = vpop.permute.xlu0 %16
    %vm18 = vcmask 7168
    %s19 = scalar_lea.vmem %s1, 2
    %20 = vst.msk [vmem:[%s19] ss:$8 sm:$0xf] %vm18, %v17
    %v21 = vld [vmem:[#allocation0] sm:$0xf]
    %22 = vrot.lane.b32.xlu0 %v21, 125
    %v23 = vpop.permute.xlu0 %22
    %vm24 = vcmask 7168
    %s25 = scalar_lea.vmem %s1, 3
    %26 = vst.msk [vmem:[%s25] ss:$8 sm:$0xf] %vm24, %v23
    %v27 = vld [vmem:[#allocation0] sm:$0xf]
    %28 = vrot.lane.b32.xlu0 %v27, 124
    %v29 = vpop.permute.xlu0 %28
    %vm30 = vcmask 7168
    %s31 = scalar_lea.vmem %s1, 4
    %32 = vst.msk [vmem:[%s31] ss:$8 sm:$0xf] %vm30, %v29
    %v33 = vld [vmem:[#allocation0] sm:$0xf]
    %34 = vrot.lane.b32.xlu0 %v33, 123
    %v35 = vpop.permute.xlu0 %34
    %vm36 = vcmask 7168
    %s37 = scalar_lea.vmem %s1, 5
    %38 = vst.msk [vmem:[%s37] ss:$8 sm:$0xf] %vm36, %v35
    %v39 = vld [vmem:[#allocation0] sm:$0xf]
    %40 = vrot.lane.b32.xlu0 %v39, 122
    %v41 = vpop.permute.xlu0 %40
    %vm42 = vcmask 7168
    %s43 = scalar_lea.vmem %s1, 6
    %44 = vst.msk [vmem:[%s43] ss:$8 sm:$0xf] %vm42, %v41
    %v45 = vld [vmem:[#allocation0] sm:$0xf]
    %46 = vrot.lane.b32.xlu0 %v45, 121
    %v47 = vpop.permute.xlu0 %46
    %vm48 = vcmask 7168
    %s49 = scalar_lea.vmem %s1, 7
    %50 = vst.msk [vmem:[%s49] ss:$8 sm:$0xf] %vm48, %v47

// kernel: up_forward.1
$region0: #{up_forward.1}
  #allocation0 [shape = 'u32[]', space=smem, size = 0x4, offset = 0x4, fixed_abs, tag = 'smem constant byte address 0x4 - core index']
  #allocation1 [shape = 'u32[72,128]{1,0:T(1,128)}', space=vmem, size = 0x9000, scoped, tag = 'internal scratch']
  %s0 = inlined_call_operand.vmem [shape: f32[32,4], index: 0, kind: input, shape index: {}]
  %s1 = inlined_call_operand.vmem [shape: f32[32,1], index: 1, kind: input, shape index: {}]
  %s2 = inlined_call_operand.hbm [shape: f32[4,49,256], index: 2, kind: input, shape index: {}]
  %s3 = inlined_call_operand.vmem [shape: f32[2,4,49], index: 3, kind: input, shape index: {}]
  %s4 = inlined_call_operand.vmem [shape: f32[2,4,256], index: 4, kind: input, shape index: {}]
  %s5 = inlined_call_operand.vmem [shape: f32[2,8,256], index: 5, kind: output, shape index: {}]
  %s6 = sld [smem:[#allocation0]]
  $region57: #{up_forward.1} parent=0
    _
  %s8 = ssub.s32 1, %s6
  %s9 = scalar_select 0, %s8, %s6
  $region1: #{up_forward.1} parent=0
    #allocation2 [shape = 'u8[229376]{0}', space=vmem, size = 0x38000, scoped, tag = 'input window, operand 2, single buffered']
    #allocation3 [shape = 's32[2]{0}', space=sflag, size = 0x8, scoped, tag = 'scoped memory for up_forward.1']
    %10 = vsyncpa [#allocation3], 0
    loop: start=0, step=1, limit=4
    $region2: #{up_forward.1} parent=1 // loop_pre_header
      _
    $region3: #{up_forward.1} parent=1 // loop_header
      %s12 = sphi 0, %s16
      %p13 = scmp.ge.s32.totalorder %s12, 4
      %s20 = sphi 0, %s20
      %s22 = sphi 0, %s20
      %s23 = sphi 0, %s22
      %s37 = sphi 0, %s23
      %s41 = sphi 0, %s41
      %s43 = sphi 0, %s41
      %s44 = sphi 0, %s43
      %s58 = sphi 0, %s44
      %s62 = sphi 0, %s62
      %s64 = sphi 0, %s62
      %s65 = sphi 0, %s64
      %s79 = sphi 0, %s65
      %s85 = sphi 0, %s87
      %s88 = sphi 0, %s85
      %s89 = sphi 0, %s88
      %s105 = sphi 0, %s89
      %s111 = sphi 0, %s113
      %s114 = sphi 0, %s111
      %s115 = sphi 0, %s114
      %s131 = sphi 0, %s115
      %s137 = sphi 0, %s139
      %s140 = sphi 0, %s137
      %s141 = sphi 0, %s140
      %s157 = sphi 0, %s141
    $region4: #{up_forward.1} parent=1 // loop_header_branch
      %15 = sbr.rel (%p13) target = $region8
    $region5: #{up_forward.1} parent=1 // loop_body
      %s17 = ssub.s32 %s12, 1
      %s18 = ssub.s32 %s12, 2
      %s19 = sadd.s32 %s12, 1
      %s21 = sadd.s32 %s20, 1
      %p24 = scmp.eq.s32.totalorder %s12, 1
      %p25 = scmp.ne.s32.totalorder %s20, %s22
      %p26 = scmp.eq.s32.totalorder %s12, 0
      %p27 = por %p25, %p26
      %p28 = scmp.ne.s32.totalorder %s20, %s22
      %p29 = scmp.eq.s32.totalorder %s17, 1
      %p30 = por %p28, %p29
      %p31 = scmp.ne.s32.totalorder %s22, %s23
      %p32 = scmp.eq.s32.totalorder %s17, 0
      %p33 = por %p31, %p32
      %p34 = scmp.ne.s32.totalorder %s22, %s23
      %p35 = scmp.eq.s32.totalorder %s18, 1
      %p36 = por %p34, %p35
      %p38 = scmp.ne.s32.totalorder %s23, %s37
      %p39 = scmp.eq.s32.totalorder %s18, 0
      %p40 = por %p38, %p39
      %s42 = sadd.s32 %s41, 1
      %p45 = scmp.eq.s32.totalorder %s12, 1
      %p46 = scmp.ne.s32.totalorder %s41, %s43
      %p47 = scmp.eq.s32.totalorder %s12, 0
      %p48 = por %p46, %p47
      %p49 = scmp.ne.s32.totalorder %s41, %s43
      %p50 = scmp.eq.s32.totalorder %s17, 1
      %p51 = por %p49, %p50
      %p52 = scmp.ne.s32.totalorder %s43, %s44
      %p53 = scmp.eq.s32.totalorder %s17, 0
      %p54 = por %p52, %p53
      %p55 = scmp.ne.s32.totalorder %s43, %s44
      %p56 = scmp.eq.s32.totalorder %s18, 1
      %p57 = por %p55, %p56
      %p59 = scmp.ne.s32.totalorder %s44, %s58
      %p60 = scmp.eq.s32.totalorder %s18, 0
      %p61 = por %p59, %p60
      %s63 = sadd.s32 %s62, 1
      %p66 = scmp.eq.s32.totalorder %s12, 1
      %p67 = scmp.ne.s32.totalorder %s62, %s64
      %p68 = scmp.eq.s32.totalorder %s12, 0
      %p69 = por %p67, %p68
      %p70 = scmp.ne.s32.totalorder %s62, %s64
      %p71 = scmp.eq.s32.totalorder %s17, 1
      %p72 = por %p70, %p71
      %p73 = scmp.ne.s32.totalorder %s64, %s65
      %p74 = scmp.eq.s32.totalorder %s17, 0
      %p75 = por %p73, %p74
      %p76 = scmp.ne.s32.totalorder %s64, %s65
      %p77 = scmp.eq.s32.totalorder %s18, 1
      %p78 = por %p76, %p77
      %p80 = scmp.ne.s32.totalorder %s65, %s79
      %p81 = scmp.eq.s32.totalorder %s18, 0
      %p82 = por %p80, %p81
      %s83 = ssub.s32 %s12, %s19
      %p84 = scmp.eq.s32.totalorder %s83, 0
      %s86 = sadd.s32 %s85, 1
      %s87 = scalar_select %p84, %s85, %s86
      %p90 = pneg %p84
      %p91 = scmp.eq.s32.totalorder %s12, 1
      %p92 = por %p90, %p91
      %p93 = scmp.ne.s32.totalorder %s85, %s88
      %p94 = scmp.eq.s32.totalorder %s12, 0
      %p95 = por %p93, %p94
      %p96 = scmp.ne.s32.totalorder %s85, %s88
      %p97 = scmp.eq.s32.totalorder %s17, 1
      %p98 = por %p96, %p97
      %p99 = scmp.ne.s32.totalorder %s88, %s89
      %p100 = scmp.eq.s32.totalorder %s17, 0
      %p101 = por %p99, %p100
      %p102 = scmp.ne.s32.totalorder %s88, %s89
      %p103 = scmp.eq.s32.totalorder %s18, 1
      %p104 = por %p102, %p103
      %p106 = scmp.ne.s32.totalorder %s89, %s105
      %p107 = scmp.eq.s32.totalorder %s18, 0
      %p108 = por %p106, %p107
      %s109 = ssub.s32 %s12, %s19
      %p110 = scmp.eq.s32.totalorder %s109, 0
      %s112 = sadd.s32 %s111, 1
      %s113 = scalar_select %p110, %s111, %s112
      %p116 = pneg %p110
      %p117 = scmp.eq.s32.totalorder %s12, 1
      %p118 = por %p116, %p117
      %p119 = scmp.ne.s32.totalorder %s111, %s114
      %p120 = scmp.eq.s32.totalorder %s12, 0
      %p121 = por %p119, %p120
      %p122 = scmp.ne.s32.totalorder %s111, %s114
      %p123 = scmp.eq.s32.totalorder %s17, 1
      %p124 = por %p122, %p123
      %p125 = scmp.ne.s32.totalorder %s114, %s115
      %p126 = scmp.eq.s32.totalorder %s17, 0
      %p127 = por %p125, %p126
      %p128 = scmp.ne.s32.totalorder %s114, %s115
      %p129 = scmp.eq.s32.totalorder %s18, 1
      %p130 = por %p128, %p129
      %p132 = scmp.ne.s32.totalorder %s115, %s131
      %p133 = scmp.eq.s32.totalorder %s18, 0
      %p134 = por %p132, %p133
      %s135 = ssub.s32 %s12, %s19
      %p136 = scmp.eq.s32.totalorder %s135, 0
      %s138 = sadd.s32 %s137, 1
      %s139 = scalar_select %p136, %s137, %s138
      %p142 = pneg %p136
      %p143 = scmp.eq.s32.totalorder %s12, 1
      %p144 = por %p142, %p143
      %p145 = scmp.ne.s32.totalorder %s137, %s140
      %p146 = scmp.eq.s32.totalorder %s12, 0
      %p147 = por %p145, %p146
      %p148 = scmp.ne.s32.totalorder %s137, %s140
      %p149 = scmp.eq.s32.totalorder %s17, 1
      %p150 = por %p148, %p149
      %p151 = scmp.ne.s32.totalorder %s140, %s141
      %p152 = scmp.eq.s32.totalorder %s17, 0
      %p153 = por %p151, %p152
      %p154 = scmp.ne.s32.totalorder %s140, %s141
      %p155 = scmp.eq.s32.totalorder %s18, 1
      %p156 = por %p154, %p155
      %p158 = scmp.ne.s32.totalorder %s141, %s157
      %p159 = scmp.eq.s32.totalorder %s18, 0
      %p160 = por %p158, %p159
      %p161 = scmp.le.s32.totalorder 1, %s12
      %p162 = scmp.lt.s32.totalorder %s12, 3
      %p163 = pnand %p161, %p162
      %p164 = pneg %p163
      // Predicated region
      $region9: #{up_forward.1} parent=5 // pred_check
        _
      $region10: #{up_forward.1} parent=5 // pred_check_branch
        %166 = sbr.rel (%p163) target = $region12
      $region11: #{up_forward.1} parent=5 // pred_region
        %s167 = ssub.s32 %s12, 1
        // Predicated region
        $region13: #{up_forward.1} parent=11 // pred_check
          %p168 = pneg %p33
        $region14: #{up_forward.1} parent=11 // pred_check_branch
          %170 = sbr.rel (%p168) target = $region16
        $region15: #{up_forward.1} parent=11 // pred_region
          _
        $region16: #{up_forward.1} parent=11 // pred_fallthru
          _
        // Predicated region
        $region17: #{up_forward.1} parent=11 // pred_check
          %p171 = pneg %p54
        $region18: #{up_forward.1} parent=11 // pred_check_branch
          %173 = sbr.rel (%p171) target = $region20
        $region19: #{up_forward.1} parent=11 // pred_region
          _
        $region20: #{up_forward.1} parent=11 // pred_fallthru
          _
        // Predicated region
        $region21: #{up_forward.1} parent=11 // pred_check
          %p174 = pneg %p75
        $region22: #{up_forward.1} parent=11 // pred_check_branch
          %176 = sbr.rel (%p174) target = $region24
        $region23: #{up_forward.1} parent=11 // pred_region
          %178 = vsyncadd [#allocation3], 0
          %s179 = sshll.u32 %s2, 4
          %s180 = int_to_ptr.hbm [resolvable:$true] %s179
          %s181 = sshll.u32 [#allocation2], 4
          %s182 = int_to_ptr.vmem [resolvable:$true] %s181
          %187 = dma.hbm_to_vmem [thread:$0]  %s180, 7168, %s182, [#allocation3], 256, 256, 16
        $region24: #{up_forward.1} parent=11 // pred_fallthru
          _
      $region12: #{up_forward.1} parent=5 // pred_fallthru
        _
      %p188 = scmp.lt.s32.totalorder %s12, 2
      // Predicated region
      $region25: #{up_forward.1} parent=5 // pred_check
        %p189 = pneg %p188
      $region26: #{up_forward.1} parent=5 // pred_check_branch
        %191 = sbr.rel (%p189) target = $region28
      $region27: #{up_forward.1} parent=5 // pred_region
        // Predicated region
        $region29: #{up_forward.1} parent=27 // pred_check
          %p192 = pneg %p95
        $region30: #{up_forward.1} parent=27 // pred_check_branch
          %194 = sbr.rel (%p192) target = $region32
        $region31: #{up_forward.1} parent=27 // pred_region
          %p195 = scmp.lt.s32.totalorder %s12, 1
          %s196 = scalar_select %p195, %s12, 1
          %s197 = smul.addr %s196, 4
          %s198 = scalar_lea.vmem %s3, %s197
        $region32: #{up_forward.1} parent=27 // pred_fallthru
          _
        // Predicated region
        $region33: #{up_forward.1} parent=27 // pred_check
          %p199 = pneg %p121
        $region34: #{up_forward.1} parent=27 // pred_check_branch
          %201 = sbr.rel (%p199) target = $region36
        $region35: #{up_forward.1} parent=27 // pred_region
          %p202 = scmp.lt.s32.totalorder %s12, 1
          %s203 = scalar_select %p202, %s12, 1
          %s204 = smul.addr %s203, 2
          %s205 = smul.addr %s204, 4
          %s206 = scalar_lea.vmem %s4, %s205
        $region36: #{up_forward.1} parent=27 // pred_fallthru
          _
      $region28: #{up_forward.1} parent=5 // pred_fallthru
        _
      %p207 = scmp.le.s32.totalorder 1, %s12
      %p208 = scmp.lt.s32.totalorder %s12, 3
      %p209 = pnand %p207, %p208
      %p210 = pneg %p209
      // Predicated region
      $region37: #{up_forward.1} parent=5 // pred_check
        _
      $region38: #{up_forward.1} parent=5 // pred_check_branch
        %212 = sbr.rel (%p209) target = $region40
      $region39: #{up_forward.1} parent=5 // pred_region
        %s213 = ssub.s32 %s12, 1
        // Predicated region
        $region41: #{up_forward.1} parent=39 // pred_check
          %p214 = pneg %p75
        $region42: #{up_forward.1} parent=39 // pred_check_branch
          %216 = sbr.rel (%p214) target = $region44
        $region43: #{up_forward.1} parent=39 // pred_region
          %218 = dma.done [#allocation3], 7168
        $region44: #{up_forward.1} parent=39 // pred_fallthru
          _
        %p219 = pneg %p33
        %p220 = pneg %p30
        %p221 = pneg %p54
        %p222 = pneg %p51
        %p223 = pneg %p75
        %p224 = pneg %p72
        %p225 = scmp.lt.s32.totalorder %s17, 1
        %s226 = scalar_select %p225, %s17, 1
        %s227 = smul.addr %s226, 4
        %s228 = scalar_lea.vmem %s3, %s227
        %p229 = pneg %p101
        %p230 = pneg %p98
        %p231 = scmp.lt.s32.totalorder %s17, 1
        %s232 = scalar_select %p231, %s17, 1
        %s233 = smul.addr %s232, 2
        %s234 = smul.addr %s233, 4
        %s235 = scalar_lea.vmem %s4, %s234
        %p236 = pneg %p127
        %p237 = pneg %p124
        %p238 = pneg %p153
        %p239 = pneg %p150
        %p240 = scmp.lt.s32.totalorder %s17, 1
        %s241 = scalar_select %p240, %s17, 1
        %s242 = smul.addr %s241, 2
        %s243 = smul.addr %s242, 8
        %s244 = scalar_lea.vmem %s5, %s243
        %p245 = scmp.lt.s32.totalorder %s17, 1
        %s246 = scalar_select %p245, %s17, 1
        %s247 = smul.addr %s246, 4
        %s248 = scalar_lea.vmem %s3, %s247
        %p249 = scmp.lt.s32.totalorder %s17, 1
        %s250 = scalar_select %p249, %s17, 1
        %s251 = smul.addr %s250, 2
        %s252 = smul.addr %s251, 4
        %s253 = scalar_lea.vmem %s4, %s252
        %p254 = scmp.lt.s32.totalorder %s17, 1
        %s255 = scalar_select %p254, %s17, 1
        %s256 = smul.addr %s255, 2
        %s257 = smul.addr %s256, 8
        %s258 = scalar_lea.vmem %s5, %s257
        %v259 = vld [vmem:[%s0] sm:$0xff]
        %v260 = vld [vmem:[%s0 + $0x8] sm:$0xff]
        %v261 = vld [vmem:[%s0 + $0x10] sm:$0xff]
        %v262 = vld [vmem:[%s0 + $0x18] sm:$0xff]
        %v263 = vld [vmem:[%s248] sm:$0xf]
        %v264 = vld [vmem:[%s1] sm:$0xff]
        %v265 = vld [vmem:[%s1 + $0x8] sm:$0xff]
        %v266 = vld [vmem:[%s1 + $0x10] sm:$0xff]
        %v267 = vld [vmem:[%s1 + $0x18] sm:$0xff]
        %269 = vset.pattern.permute.xlu0 0
        %270 = vperm.xlu0 %269, %v264
        %v271 = vpop.permute.xlu0 %270
        %274 = vset.pattern.permute.xlu0 0
        %275 = vperm.xlu0 %274, %v265
        %v276 = vpop.permute.xlu0 %275
        %279 = vset.pattern.permute.xlu0 0
        %280 = vperm.xlu0 %279, %v266
        %v281 = vpop.permute.xlu0 %280
        %284 = vset.pattern.permute.xlu0 0
        %285 = vperm.xlu0 %284, %v267
        %v286 = vpop.permute.xlu0 %285
        %vm288 = vcmask 31744
        %v290 = vsel %vm288, %v259, 0
        %v293 = vsel %vm288, %v260, 0
        %v296 = vsel %vm288, %v261, 0
        %v299 = vsel %vm288, %v262, 0
        %vm301 = vcmask 1043456
        %v303 = vsel %vm301, %v263, 0
        %305 = vmatpush.msra.mxu0 0.0
        %306 = vmatpush.msra.mxu0 0.0
        %307 = vmatpush.msra.mxu0 0.0
        %308 = vmatpush.msra.mxu0 0.0
        %309 = vmatpush.msra.mxu0 0.0
        %310 = vmatpush.msra.mxu0 0.0
        %311 = vmatpush.msra.mxu0 0.0
        %312 = vmatpush.msra.mxu0 0.0
        %313 = vmatpush.msra.mxu0 0.0
        %314 = vmatpush.msra.mxu0 0.0
        %315 = vmatpush.msra.mxu0 0.0
        %316 = vmatpush.msra.mxu0 0.0
        %317 = vmatpush.msra.mxu0 0.0
        %318 = vmatpush.msra.mxu0 0.0
        %319 = vmatpush.msra.mxu0 0.0
        %320 = vmatpush.msra.mxu0 %v303
        %321 = vmatmul.f32.gmra.mxu0 %v290
        %v322 = vpop.f32.mrf.mxu0
        %v323 = vadd.f32 %v271, %v322
        %324 = vmatmul.f32.gmra.mxu0 %v293
        %v325 = vpop.f32.mrf.mxu0
        %v326 = vadd.f32 %v276, %v325
        %327 = vmatmul.f32.gmra.mxu0 %v296
        %v328 = vpop.f32.mrf.mxu0
        %v329 = vadd.f32 %v281, %v328
        %330 = vmatmul.f32.gmra.mxu0 %v299
        %v331 = vpop.f32.mrf.mxu0
        %v332 = vadd.f32 %v286, %v331
        %333 = vdwg.mxu0
        %v334 = vld [vmem:[#allocation2] sm:$0xff]
        %v335 = vld [vmem:[#allocation2 + $0x8] sm:$0xff]
        %v336 = vld [vmem:[#allocation2 + $0x10] sm:$0xff]
        %v337 = vld [vmem:[#allocation2 + $0x18] sm:$0xff]
        %v338 = vld [vmem:[#allocation2 + $0x20] sm:$0xff]
        %v339 = vld [vmem:[#allocation2 + $0x28] sm:$0xff]
        %v340 = vld [vmem:[#allocation2 + $0x30] sm:$0xff]
        %v341 = vld [vmem:[#allocation2 + $0x38] sm:$0xff]
        %v342 = vld [vmem:[#allocation2 + $0x40] sm:$0xff]
        %v343 = vld [vmem:[#allocation2 + $0x48] sm:$0xff]
        %v344 = vld [vmem:[#allocation2 + $0x50] sm:$0xff]
        %v345 = vld [vmem:[#allocation2 + $0x58] sm:$0xff]
        %v346 = vld [vmem:[#allocation2 + $0x60] sm:$0x1]
        %v347 = vld [vmem:[#allocation2 + $0x68] sm:$0x1]
        %s348 = scalar_lea.vmem [#allocation2], 112
        %v349 = vld [vmem:[%s348] sm:$0xff]
        %v350 = vld [vmem:[%s348 + $0x8] sm:$0xff]
        %v351 = vld [vmem:[%s348 + $0x10] sm:$0xff]
        %v352 = vld [vmem:[%s348 + $0x18] sm:$0xff]
        %v353 = vld [vmem:[%s348 + $0x20] sm:$0xff]
        %v354 = vld [vmem:[%s348 + $0x28] sm:$0xff]
        %v355 = vld [vmem:[%s348 + $0x30] sm:$0xff]
        %v356 = vld [vmem:[%s348 + $0x38] sm:$0xff]
        %v357 = vld [vmem:[%s348 + $0x40] sm:$0xff]
        %v358 = vld [vmem:[%s348 + $0x48] sm:$0xff]
        %v359 = vld [vmem:[%s348 + $0x50] sm:$0xff]
        %v360 = vld [vmem:[%s348 + $0x58] sm:$0xff]
        %v361 = vld [vmem:[%s348 + $0x60] sm:$0x1]
        %v362 = vld [vmem:[%s348 + $0x68] sm:$0x1]
        %vm363 = vcmask 400384
        %v365 = vsel %vm363, %v326, 0
        %vm367 = vcmask 1040384
        %v369 = vsel %vm367, %v361, 0
        %v372 = vsel %vm367, %v362, 0
        %374 = vmatpush.msra.mxu0 0.0
        %375 = vmatpush.msra.mxu0 0.0
        %376 = vmatpush.msra.mxu0 0.0
        %377 = vmatpush.msra.mxu0 0.0
        %378 = vmatpush.msra.mxu0 0.0
        %379 = vmatpush.msra.mxu0 0.0
        %380 = vmatpush.msra.mxu0 0.0
        %381 = vmatpush.msra.mxu0 0.0
        %382 = vmatpush.msra.mxu0 0.0
        %v383 = vand.u32 %v369, 4294901760
        %384 = vmatpush.msra.mxu0 %v383
        %v385 = vand.u32 %v359, 4294901760
        %386 = vmatpush.msra.mxu0 %v385
        %v387 = vand.u32 %v357, 4294901760
        %388 = vmatpush.msra.mxu0 %v387
        %v389 = vand.u32 %v355, 4294901760
        %390 = vmatpush.msra.mxu0 %v389
        %v391 = vand.u32 %v353, 4294901760
        %392 = vmatpush.msra.mxu0 %v391
        %v393 = vand.u32 %v351, 4294901760
        %394 = vmatpush.msra.mxu0 %v393
        %v395 = vand.u32 %v349, 4294901760
        %396 = vmatpush.msra.mxu0 %v395
        %v397 = vand.u32 %v365, 4294901760
        %v398 = vsub.f32 %v365, %v397
        %v399 = vand.u32 %v398, 4294901760
        %v400 = vsub.f32 %v398, %v399
        %v401 = vand.u32 %v400, 4294901760
        %402 = vmatmul.f32.gmra.mxu0 %v401
        %v403 = vpop.f32.mrf.mxu0
        %v404 = vadd.f32 0.0, %v403
        %405 = vdwg.mxu0
        %406 = vmatpush.msra.mxu0 0.0
        %407 = vmatpush.msra.mxu0 0.0
        %408 = vmatpush.msra.mxu0 0.0
        %409 = vmatpush.msra.mxu0 0.0
        %410 = vmatpush.msra.mxu0 0.0
        %411 = vmatpush.msra.mxu0 0.0
        %412 = vmatpush.msra.mxu0 0.0
        %413 = vmatpush.msra.mxu0 0.0
        %414 = vmatpush.msra.mxu0 0.0
        %v415 = vand.u32 %v369, 4294901760
        %v416 = vsub.f32 %v369, %v415
        %v417 = vand.u32 %v416, 4294901760
        %v418 = vsub.f32 %v416, %v417
        %v419 = vand.u32 %v418, 4294901760
        %420 = vmatpush.msra.mxu0 %v419
        %v421 = vand.u32 %v359, 4294901760
        %v422 = vsub.f32 %v359, %v421
        %v423 = vand.u32 %v422, 4294901760
        %v424 = vsub.f32 %v422, %v423
        %v425 = vand.u32 %v424, 4294901760
        %426 = vmatpush.msra.mxu0 %v425
        %v427 = vand.u32 %v357, 4294901760
        %v428 = vsub.f32 %v357, %v427
        %v429 = vand.u32 %v428, 4294901760
        %v430 = vsub.f32 %v428, %v429
        %v431 = vand.u32 %v430, 4294901760
        %432 = vmatpush.msra.mxu0 %v431
        %v433 = vand.u32 %v355, 4294901760
        %v434 = vsub.f32 %v355, %v433
        %v435 = vand.u32 %v434, 4294901760
        %v436 = vsub.f32 %v434, %v435
        %v437 = vand.u32 %v436, 4294901760
        %438 = vmatpush.msra.mxu0 %v437
        %v439 = vand.u32 %v353, 4294901760
        %v440 = vsub.f32 %v353, %v439
        %v441 = vand.u32 %v440, 4294901760
        %v442 = vsub.f32 %v440, %v441
        %v443 = vand.u32 %v442, 4294901760
        %444 = vmatpush.msra.mxu0 %v443
        %v445 = vand.u32 %v351, 4294901760
        %v446 = vsub.f32 %v351, %v445
        %v447 = vand.u32 %v446, 4294901760
        %v448 = vsub.f32 %v446, %v447
        %v449 = vand.u32 %v448, 4294901760
        %450 = vmatpush.msra.mxu0 %v449
        %v451 = vand.u32 %v349, 4294901760
        %v452 = vsub.f32 %v349, %v451
        %v453 = vand.u32 %v452, 4294901760
        %v454 = vsub.f32 %v452, %v453
        %v455 = vand.u32 %v454, 4294901760
        %456 = vmatpush.msra.mxu0 %v455
        %v457 = vand.u32 %v365, 4294901760
        %458 = vmatmul.f32.gmra.mxu0 %v457
        %v459 = vpop.f32.mrf.mxu0
        %v460 = vadd.f32 %v404, %v459
        %461 = vdwg.mxu0
        %462 = vmatpush.msra.mxu0 0.0
        %463 = vmatpush.msra.mxu0 0.0
        %464 = vmatpush.msra.mxu0 0.0
        %465 = vmatpush.msra.mxu0 0.0
        %466 = vmatpush.msra.mxu0 0.0
        %467 = vmatpush.msra.mxu0 0.0
        %468 = vmatpush.msra.mxu0 0.0
        %469 = vmatpush.msra.mxu0 0.0
        %470 = vmatpush.msra.mxu0 0.0
        %v471 = vand.u32 %v369, 4294901760
        %v472 = vsub.f32 %v369, %v471
        %473 = vmatpush.msra.mxu0 %v472
        %v474 = vand.u32 %v359, 4294901760
        %v475 = vsub.f32 %v359, %v474
        %476 = vmatpush.msra.mxu0 %v475
        %v477 = vand.u32 %v357, 4294901760
        %v478 = vsub.f32 %v357, %v477
        %479 = vmatpush.msra.mxu0 %v478
        %v480 = vand.u32 %v355, 4294901760
        %v481 = vsub.f32 %v355, %v480
        %482 = vmatpush.msra.mxu0 %v481
        %v483 = vand.u32 %v353, 4294901760
        %v484 = vsub.f32 %v353, %v483
        %485 = vmatpush.msra.mxu0 %v484
        %v486 = vand.u32 %v351, 4294901760
        %v487 = vsub.f32 %v351, %v486
        %488 = vmatpush.msra.mxu0 %v487
        %v489 = vand.u32 %v349, 4294901760
        %v490 = vsub.f32 %v349, %v489
        %491 = vmatpush.msra.mxu0 %v490
        %v492 = vand.u32 %v365, 4294901760
        %v493 = vsub.f32 %v365, %v492
        %494 = vmatmul.f32.gmra.mxu0 %v493
        %v495 = vpop.f32.mrf.mxu0
        %v496 = vadd.f32 %v460, %v495
        %497 = vdwg.mxu0
        %498 = vmatpush.msra.mxu0 0.0
        %499 = vmatpush.msra.mxu0 0.0
        %500 = vmatpush.msra.mxu0 0.0
        %501 = vmatpush.msra.mxu0 0.0
        %502 = vmatpush.msra.mxu0 0.0
        %503 = vmatpush.msra.mxu0 0.0
        %504 = vmatpush.msra.mxu0 0.0
        %505 = vmatpush.msra.mxu0 0.0
        %506 = vmatpush.msra.mxu0 0.0
        %v507 = vand.u32 %v369, 4294901760
        %508 = vmatpush.msra.mxu0 %v507
        %v509 = vand.u32 %v359, 4294901760
        %510 = vmatpush.msra.mxu0 %v509
        %v511 = vand.u32 %v357, 4294901760
        %512 = vmatpush.msra.mxu0 %v511
        %v513 = vand.u32 %v355, 4294901760
        %514 = vmatpush.msra.mxu0 %v513
        %v515 = vand.u32 %v353, 4294901760
        %516 = vmatpush.msra.mxu0 %v515
        %v517 = vand.u32 %v351, 4294901760
        %518 = vmatpush.msra.mxu0 %v517
        %v519 = vand.u32 %v349, 4294901760
        %520 = vmatpush.msra.mxu0 %v519
        %v521 = vand.u32 %v365, 4294901760
        %v522 = vsub.f32 %v365, %v521
        %v523 = vand.u32 %v522, 4294901760
        %524 = vmatmul.f32.gmra.mxu0 %v523
        %v525 = vpop.f32.mrf.mxu0
        %v526 = vadd.f32 %v496, %v525
        %527 = vdwg.mxu0
        %528 = vmatpush.msra.mxu0 0.0
        %529 = vmatpush.msra.mxu0 0.0
        %530 = vmatpush.msra.mxu0 0.0
        %531 = vmatpush.msra.mxu0 0.0
        %532 = vmatpush.msra.mxu0 0.0
        %533 = vmatpush.msra.mxu0 0.0
        %534 = vmatpush.msra.mxu0 0.0
        %535 = vmatpush.msra.mxu0 0.0
        %536 = vmatpush.msra.mxu0 0.0
        %v537 = vand.u32 %v369, 4294901760
        %v538 = vsub.f32 %v369, %v537
        %v539 = vand.u32 %v538, 4294901760
        %540 = vmatpush.msra.mxu0 %v539
        %v541 = vand.u32 %v359, 4294901760
        %v542 = vsub.f32 %v359, %v541
        %v543 = vand.u32 %v542, 4294901760
        %544 = vmatpush.msra.mxu0 %v543
        %v545 = vand.u32 %v357, 4294901760
        %v546 = vsub.f32 %v357, %v545
        %v547 = vand.u32 %v546, 4294901760
        %548 = vmatpush.msra.mxu0 %v547
        %v549 = vand.u32 %v355, 4294901760
        %v550 = vsub.f32 %v355, %v549
        %v551 = vand.u32 %v550, 4294901760
        %552 = vmatpush.msra.mxu0 %v551
        %v553 = vand.u32 %v353, 4294901760
        %v554 = vsub.f32 %v353, %v553
        %v555 = vand.u32 %v554, 4294901760
        %556 = vmatpush.msra.mxu0 %v555
        %v557 = vand.u32 %v351, 4294901760
        %v558 = vsub.f32 %v351, %v557
        %v559 = vand.u32 %v558, 4294901760
        %560 = vmatpush.msra.mxu0 %v559
        %v561 = vand.u32 %v349, 4294901760
        %v562 = vsub.f32 %v349, %v561
        %v563 = vand.u32 %v562, 4294901760
        %564 = vmatpush.msra.mxu0 %v563
        %v565 = vand.u32 %v365, 4294901760
        %566 = vmatmul.f32.gmra.mxu0 %v565
        %v567 = vpop.f32.mrf.mxu0
        %v568 = vadd.f32 %v526, %v567
        %569 = vdwg.mxu0
        %570 = vmatpush.msra.mxu0 0.0
        %571 = vmatpush.msra.mxu0 0.0
        %572 = vmatpush.msra.mxu0 0.0
        %573 = vmatpush.msra.mxu0 0.0
        %574 = vmatpush.msra.mxu0 0.0
        %575 = vmatpush.msra.mxu0 0.0
        %576 = vmatpush.msra.mxu0 0.0
        %577 = vmatpush.msra.mxu0 0.0
        %578 = vmatpush.msra.mxu0 0.0
        %v579 = vand.u32 %v369, 4294901760
        %580 = vmatpush.msra.mxu0 %v579
        %v581 = vand.u32 %v359, 4294901760
        %582 = vmatpush.msra.mxu0 %v581
        %v583 = vand.u32 %v357, 4294901760
        %584 = vmatpush.msra.mxu0 %v583
        %v585 = vand.u32 %v355, 4294901760
        %586 = vmatpush.msra.mxu0 %v585
        %v587 = vand.u32 %v353, 4294901760
        %588 = vmatpush.msra.mxu0 %v587
        %v589 = vand.u32 %v351, 4294901760
        %590 = vmatpush.msra.mxu0 %v589
        %v591 = vand.u32 %v349, 4294901760
        %592 = vmatpush.msra.mxu0 %v591
        %v593 = vand.u32 %v365, 4294901760
        %594 = vmatmul.f32.gmra.mxu0 %v593
        %v595 = vpop.f32.mrf.mxu0
        %v596 = vadd.f32 %v568, %v595
        %597 = vdwg.mxu0
        %598 = vmatpush.msra.mxu0 0.0
        %599 = vmatpush.msra.mxu0 0.0
        %600 = vmatpush.msra.mxu0 0.0
        %601 = vmatpush.msra.mxu0 0.0
        %602 = vmatpush.msra.mxu0 0.0
        %603 = vmatpush.msra.mxu0 0.0
        %604 = vmatpush.msra.mxu0 0.0
        %605 = vmatpush.msra.mxu0 0.0
        %606 = vmatpush.msra.mxu0 0.0
        %v607 = vand.u32 %v372, 4294901760
        %608 = vmatpush.msra.mxu0 %v607
        %v609 = vand.u32 %v360, 4294901760
        %610 = vmatpush.msra.mxu0 %v609
        %v611 = vand.u32 %v358, 4294901760
        %612 = vmatpush.msra.mxu0 %v611
        %v613 = vand.u32 %v356, 4294901760
        %614 = vmatpush.msra.mxu0 %v613
        %v615 = vand.u32 %v354, 4294901760
        %616 = vmatpush.msra.mxu0 %v615
        %v617 = vand.u32 %v352, 4294901760
        %618 = vmatpush.msra.mxu0 %v617
        %v619 = vand.u32 %v350, 4294901760
        %620 = vmatpush.msra.mxu0 %v619
        %v621 = vand.u32 %v365, 4294901760
        %v622 = vsub.f32 %v365, %v621
        %v623 = vand.u32 %v622, 4294901760
        %v624 = vsub.f32 %v622, %v623
        %v625 = vand.u32 %v624, 4294901760
        %626 = vmatmul.f32.gmra.mxu0 %v625
        %v627 = vpop.f32.mrf.mxu0
        %v628 = vadd.f32 0.0, %v627
        %629 = vdwg.mxu0
        %630 = vmatpush.msra.mxu0 0.0
        %631 = vmatpush.msra.mxu0 0.0
        %632 = vmatpush.msra.mxu0 0.0
        %633 = vmatpush.msra.mxu0 0.0
        %634 = vmatpush.msra.mxu0 0.0
        %635 = vmatpush.msra.mxu0 0.0
        %636 = vmatpush.msra.mxu0 0.0
        %637 = vmatpush.msra.mxu0 0.0
        %638 = vmatpush.msra.mxu0 0.0
        %v639 = vand.u32 %v372, 4294901760
        %v640 = vsub.f32 %v372, %v639
        %v641 = vand.u32 %v640, 4294901760
        %v642 = vsub.f32 %v640, %v641
        %v643 = vand.u32 %v642, 4294901760
        %644 = vmatpush.msra.mxu0 %v643
        %v645 = vand.u32 %v360, 4294901760
        %v646 = vsub.f32 %v360, %v645
        %v647 = vand.u32 %v646, 4294901760
        %v648 = vsub.f32 %v646, %v647
        %v649 = vand.u32 %v648, 4294901760
        %650 = vmatpush.msra.mxu0 %v649
        %v651 = vand.u32 %v358, 4294901760
        %v652 = vsub.f32 %v358, %v651
        %v653 = vand.u32 %v652, 4294901760
        %v654 = vsub.f32 %v652, %v653
        %v655 = vand.u32 %v654, 4294901760
        %656 = vmatpush.msra.mxu0 %v655
        %v657 = vand.u32 %v356, 4294901760
        %v658 = vsub.f32 %v356, %v657
        %v659 = vand.u32 %v658, 4294901760
        %v660 = vsub.f32 %v658, %v659
        %v661 = vand.u32 %v660, 4294901760
        %662 = vmatpush.msra.mxu0 %v661
        %v663 = vand.u32 %v354, 4294901760
        %v664 = vsub.f32 %v354, %v663
        %v665 = vand.u32 %v664, 4294901760
        %v666 = vsub.f32 %v664, %v665
        %v667 = vand.u32 %v666, 4294901760
        %668 = vmatpush.msra.mxu0 %v667
        %v669 = vand.u32 %v352, 4294901760
        %v670 = vsub.f32 %v352, %v669
        %v671 = vand.u32 %v670, 4294901760
        %v672 = vsub.f32 %v670, %v671
        %v673 = vand.u32 %v672, 4294901760
        %674 = vmatpush.msra.mxu0 %v673
        %v675 = vand.u32 %v350, 4294901760
        %v676 = vsub.f32 %v350, %v675
        %v677 = vand.u32 %v676, 4294901760
        %v678 = vsub.f32 %v676, %v677
        %v679 = vand.u32 %v678, 4294901760
        %680 = vmatpush.msra.mxu0 %v679
        %v681 = vand.u32 %v365, 4294901760
        %682 = vmatmul.f32.gmra.mxu0 %v681
        %v683 = vpop.f32.mrf.mxu0
        %v684 = vadd.f32 %v628, %v683
        %685 = vdwg.mxu0
        %686 = vmatpush.msra.mxu0 0.0
        %687 = vmatpush.msra.mxu0 0.0
        %688 = vmatpush.msra.mxu0 0.0
        %689 = vmatpush.msra.mxu0 0.0
        %690 = vmatpush.msra.mxu0 0.0
        %691 = vmatpush.msra.mxu0 0.0
        %692 = vmatpush.msra.mxu0 0.0
        %693 = vmatpush.msra.mxu0 0.0
        %694 = vmatpush.msra.mxu0 0.0
        %v695 = vand.u32 %v372, 4294901760
        %v696 = vsub.f32 %v372, %v695
        %697 = vmatpush.msra.mxu0 %v696
        %v698 = vand.u32 %v360, 4294901760
        %v699 = vsub.f32 %v360, %v698
        %700 = vmatpush.msra.mxu0 %v699
        %v701 = vand.u32 %v358, 4294901760
        %v702 = vsub.f32 %v358, %v701
        %703 = vmatpush.msra.mxu0 %v702
        %v704 = vand.u32 %v356, 4294901760
        %v705 = vsub.f32 %v356, %v704
        %706 = vmatpush.msra.mxu0 %v705
        %v707 = vand.u32 %v354, 4294901760
        %v708 = vsub.f32 %v354, %v707
        %709 = vmatpush.msra.mxu0 %v708
        %v710 = vand.u32 %v352, 4294901760
        %v711 = vsub.f32 %v352, %v710
        %712 = vmatpush.msra.mxu0 %v711
        %v713 = vand.u32 %v350, 4294901760
        %v714 = vsub.f32 %v350, %v713
        %715 = vmatpush.msra.mxu0 %v714
        %v716 = vand.u32 %v365, 4294901760
        %v717 = vsub.f32 %v365, %v716
        %718 = vmatmul.f32.gmra.mxu0 %v717
        %v719 = vpop.f32.mrf.mxu0
        %v720 = vadd.f32 %v684, %v719
        %721 = vdwg.mxu0
        %722 = vmatpush.msra.mxu0 0.0
        %723 = vmatpush.msra.mxu0 0.0
        %724 = vmatpush.msra.mxu0 0.0
        %725 = vmatpush.msra.mxu0 0.0
        %726 = vmatpush.msra.mxu0 0.0
        %727 = vmatpush.msra.mxu0 0.0
        %728 = vmatpush.msra.mxu0 0.0
        %729 = vmatpush.msra.mxu0 0.0
        %730 = vmatpush.msra.mxu0 0.0
        %v731 = vand.u32 %v372, 4294901760
        %732 = vmatpush.msra.mxu0 %v731
        %v733 = vand.u32 %v360, 4294901760
        %734 = vmatpush.msra.mxu0 %v733
        %v735 = vand.u32 %v358, 4294901760
        %736 = vmatpush.msra.mxu0 %v735
        %v737 = vand.u32 %v356, 4294901760
        %738 = vmatpush.msra.mxu0 %v737
        %v739 = vand.u32 %v354, 4294901760
        %740 = vmatpush.msra.mxu0 %v739
        %v741 = vand.u32 %v352, 4294901760
        %742 = vmatpush.msra.mxu0 %v741
        %v743 = vand.u32 %v350, 4294901760
        %744 = vmatpush.msra.mxu0 %v743
        %v745 = vand.u32 %v365, 4294901760
        %v746 = vsub.f32 %v365, %v745
        %v747 = vand.u32 %v746, 4294901760
        %748 = vmatmul.f32.gmra.mxu0 %v747
        %v749 = vpop.f32.mrf.mxu0
        %v750 = vadd.f32 %v720, %v749
        %751 = vdwg.mxu0
        %752 = vmatpush.msra.mxu0 0.0
        %753 = vmatpush.msra.mxu0 0.0
        %754 = vmatpush.msra.mxu0 0.0
        %755 = vmatpush.msra.mxu0 0.0
        %756 = vmatpush.msra.mxu0 0.0
        %757 = vmatpush.msra.mxu0 0.0
        %758 = vmatpush.msra.mxu0 0.0
        %759 = vmatpush.msra.mxu0 0.0
        %760 = vmatpush.msra.mxu0 0.0
        %v761 = vand.u32 %v372, 4294901760
        %v762 = vsub.f32 %v372, %v761
        %v763 = vand.u32 %v762, 4294901760
        %764 = vmatpush.msra.mxu0 %v763
        %v765 = vand.u32 %v360, 4294901760
        %v766 = vsub.f32 %v360, %v765
        %v767 = vand.u32 %v766, 4294901760
        %768 = vmatpush.msra.mxu0 %v767
        %v769 = vand.u32 %v358, 4294901760
        %v770 = vsub.f32 %v358, %v769
        %v771 = vand.u32 %v770, 4294901760
        %772 = vmatpush.msra.mxu0 %v771
        %v773 = vand.u32 %v356, 4294901760
        %v774 = vsub.f32 %v356, %v773
        %v775 = vand.u32 %v774, 4294901760
        %776 = vmatpush.msra.mxu0 %v775
        %v777 = vand.u32 %v354, 4294901760
        %v778 = vsub.f32 %v354, %v777
        %v779 = vand.u32 %v778, 4294901760
        %780 = vmatpush.msra.mxu0 %v779
        %v781 = vand.u32 %v352, 4294901760
        %v782 = vsub.f32 %v352, %v781
        %v783 = vand.u32 %v782, 4294901760
        %784 = vmatpush.msra.mxu0 %v783
        %v785 = vand.u32 %v350, 4294901760
        %v786 = vsub.f32 %v350, %v785
        %v787 = vand.u32 %v786, 4294901760
        %788 = vmatpush.msra.mxu0 %v787
        %v789 = vand.u32 %v365, 4294901760
        %790 = vmatmul.f32.gmra.mxu0 %v789
        %v791 = vpop.f32.mrf.mxu0
        %v792 = vadd.f32 %v750, %v791
        %793 = vdwg.mxu0
        %794 = vmatpush.msra.mxu0 0.0
        %795 = vmatpush.msra.mxu0 0.0
        %796 = vmatpush.msra.mxu0 0.0
        %797 = vmatpush.msra.mxu0 0.0
        %798 = vmatpush.msra.mxu0 0.0
        %799 = vmatpush.msra.mxu0 0.0
        %800 = vmatpush.msra.mxu0 0.0
        %801 = vmatpush.msra.mxu0 0.0
        %802 = vmatpush.msra.mxu0 0.0
        %v803 = vand.u32 %v372, 4294901760
        %804 = vmatpush.msra.mxu0 %v803
        %v805 = vand.u32 %v360, 4294901760
        %806 = vmatpush.msra.mxu0 %v805
        %v807 = vand.u32 %v358, 4294901760
        %808 = vmatpush.msra.mxu0 %v807
        %v809 = vand.u32 %v356, 4294901760
        %810 = vmatpush.msra.mxu0 %v809
        %v811 = vand.u32 %v354, 4294901760
        %812 = vmatpush.msra.mxu0 %v811
        %v813 = vand.u32 %v352, 4294901760
        %814 = vmatpush.msra.mxu0 %v813
        %v815 = vand.u32 %v350, 4294901760
        %816 = vmatpush.msra.mxu0 %v815
        %v817 = vand.u32 %v365, 4294901760
        %818 = vmatmul.f32.gmra.mxu0 %v817
        %v819 = vpop.f32.mrf.mxu0
        %v820 = vadd.f32 %v792, %v819
        %821 = vdwg.mxu0
        %v823 = vsel %vm363, %v323, 0
        %v826 = vsel %vm367, %v346, 0
        %v829 = vsel %vm367, %v347, 0
        %831 = vmatpush.msra.mxu0 0.0
        %832 = vmatpush.msra.mxu0 0.0
        %833 = vmatpush.msra.mxu0 0.0
        %834 = vmatpush.msra.mxu0 0.0
        %835 = vmatpush.msra.mxu0 0.0
        %836 = vmatpush.msra.mxu0 0.0
        %837 = vmatpush.msra.mxu0 0.0
        %838 = vmatpush.msra.mxu0 0.0
        %839 = vmatpush.msra.mxu0 0.0
        %v840 = vand.u32 %v826, 4294901760
        %841 = vmatpush.msra.mxu0 %v840
        %v842 = vand.u32 %v344, 4294901760
        %843 = vmatpush.msra.mxu0 %v842
        %v844 = vand.u32 %v342, 4294901760
        %845 = vmatpush.msra.mxu0 %v844
        %v846 = vand.u32 %v340, 4294901760
        %847 = vmatpush.msra.mxu0 %v846
        %v848 = vand.u32 %v338, 4294901760
        %849 = vmatpush.msra.mxu0 %v848
        %v850 = vand.u32 %v336, 4294901760
        %851 = vmatpush.msra.mxu0 %v850
        %v852 = vand.u32 %v334, 4294901760
        %853 = vmatpush.msra.mxu0 %v852
        %v854 = vand.u32 %v823, 4294901760
        %v855 = vsub.f32 %v823, %v854
        %v856 = vand.u32 %v855, 4294901760
        %v857 = vsub.f32 %v855, %v856
        %v858 = vand.u32 %v857, 4294901760
        %859 = vmatmul.f32.gmra.mxu0 %v858
        %v860 = vpop.f32.mrf.mxu0
        %v861 = vadd.f32 %v596, %v860
        %862 = vdwg.mxu0
        %863 = vmatpush.msra.mxu0 0.0
        %864 = vmatpush.msra.mxu0 0.0
        %865 = vmatpush.msra.mxu0 0.0
        %866 = vmatpush.msra.mxu0 0.0
        %867 = vmatpush.msra.mxu0 0.0
        %868 = vmatpush.msra.mxu0 0.0
        %869 = vmatpush.msra.mxu0 0.0
        %870 = vmatpush.msra.mxu0 0.0
        %871 = vmatpush.msra.mxu0 0.0
        %v872 = vand.u32 %v826, 4294901760
        %v873 = vsub.f32 %v826, %v872
        %v874 = vand.u32 %v873, 4294901760
        %v875 = vsub.f32 %v873, %v874
        %v876 = vand.u32 %v875, 4294901760
        %877 = vmatpush.msra.mxu0 %v876
        %v878 = vand.u32 %v344, 4294901760
        %v879 = vsub.f32 %v344, %v878
        %v880 = vand.u32 %v879, 4294901760
        %v881 = vsub.f32 %v879, %v880
        %v882 = vand.u32 %v881, 4294901760
        %883 = vmatpush.msra.mxu0 %v882
        %v884 = vand.u32 %v342, 4294901760
        %v885 = vsub.f32 %v342, %v884
        %v886 = vand.u32 %v885, 4294901760
        %v887 = vsub.f32 %v885, %v886
        %v888 = vand.u32 %v887, 4294901760
        %889 = vmatpush.msra.mxu0 %v888
        %v890 = vand.u32 %v340, 4294901760
        %v891 = vsub.f32 %v340, %v890
        %v892 = vand.u32 %v891, 4294901760
        %v893 = vsub.f32 %v891, %v892
        %v894 = vand.u32 %v893, 4294901760
        %895 = vmatpush.msra.mxu0 %v894
        %v896 = vand.u32 %v338, 4294901760
        %v897 = vsub.f32 %v338, %v896
        %v898 = vand.u32 %v897, 4294901760
        %v899 = vsub.f32 %v897, %v898
        %v900 = vand.u32 %v899, 4294901760
        %901 = vmatpush.msra.mxu0 %v900
        %v902 = vand.u32 %v336, 4294901760
        %v903 = vsub.f32 %v336, %v902
        %v904 = vand.u32 %v903, 4294901760
        %v905 = vsub.f32 %v903, %v904
        %v906 = vand.u32 %v905, 4294901760
        %907 = vmatpush.msra.mxu0 %v906
        %v908 = vand.u32 %v334, 4294901760
        %v909 = vsub.f32 %v334, %v908
        %v910 = vand.u32 %v909, 4294901760
        %v911 = vsub.f32 %v909, %v910
        %v912 = vand.u32 %v911, 4294901760
        %913 = vmatpush.msra.mxu0 %v912
        %v914 = vand.u32 %v823, 4294901760
        %915 = vmatmul.f32.gmra.mxu0 %v914
        %v916 = vpop.f32.mrf.mxu0
        %v917 = vadd.f32 %v861, %v916
        %918 = vdwg.mxu0
        %919 = vmatpush.msra.mxu0 0.0
        %920 = vmatpush.msra.mxu0 0.0
        %921 = vmatpush.msra.mxu0 0.0
        %922 = vmatpush.msra.mxu0 0.0
        %923 = vmatpush.msra.mxu0 0.0
        %924 = vmatpush.msra.mxu0 0.0
        %925 = vmatpush.msra.mxu0 0.0
        %926 = vmatpush.msra.mxu0 0.0
        %927 = vmatpush.msra.mxu0 0.0
        %v928 = vand.u32 %v826, 4294901760
        %v929 = vsub.f32 %v826, %v928
        %930 = vmatpush.msra.mxu0 %v929
        %v931 = vand.u32 %v344, 4294901760
        %v932 = vsub.f32 %v344, %v931
        %933 = vmatpush.msra.mxu0 %v932
        %v934 = vand.u32 %v342, 4294901760
        %v935 = vsub.f32 %v342, %v934
        %936 = vmatpush.msra.mxu0 %v935
        %v937 = vand.u32 %v340, 4294901760
        %v938 = vsub.f32 %v340, %v937
        %939 = vmatpush.msra.mxu0 %v938
        %v940 = vand.u32 %v338, 4294901760
        %v941 = vsub.f32 %v338, %v940
        %942 = vmatpush.msra.mxu0 %v941
        %v943 = vand.u32 %v336, 4294901760
        %v944 = vsub.f32 %v336, %v943
        %945 = vmatpush.msra.mxu0 %v944
        %v946 = vand.u32 %v334, 4294901760
        %v947 = vsub.f32 %v334, %v946
        %948 = vmatpush.msra.mxu0 %v947
        %v949 = vand.u32 %v823, 4294901760
        %v950 = vsub.f32 %v823, %v949
        %951 = vmatmul.f32.gmra.mxu0 %v950
        %v952 = vpop.f32.mrf.mxu0
        %v953 = vadd.f32 %v917, %v952
        %954 = vdwg.mxu0
        %955 = vmatpush.msra.mxu0 0.0
        %956 = vmatpush.msra.mxu0 0.0
        %957 = vmatpush.msra.mxu0 0.0
        %958 = vmatpush.msra.mxu0 0.0
        %959 = vmatpush.msra.mxu0 0.0
        %960 = vmatpush.msra.mxu0 0.0
        %961 = vmatpush.msra.mxu0 0.0
        %962 = vmatpush.msra.mxu0 0.0
        %963 = vmatpush.msra.mxu0 0.0
        %v964 = vand.u32 %v826, 4294901760
        %965 = vmatpush.msra.mxu0 %v964
        %v966 = vand.u32 %v344, 4294901760
        %967 = vmatpush.msra.mxu0 %v966
        %v968 = vand.u32 %v342, 4294901760
        %969 = vmatpush.msra.mxu0 %v968
        %v970 = vand.u32 %v340, 4294901760
        %971 = vmatpush.msra.mxu0 %v970
        %v972 = vand.u32 %v338, 4294901760
        %973 = vmatpush.msra.mxu0 %v972
        %v974 = vand.u32 %v336, 4294901760
        %975 = vmatpush.msra.mxu0 %v974
        %v976 = vand.u32 %v334, 4294901760
        %977 = vmatpush.msra.mxu0 %v976
        %v978 = vand.u32 %v823, 4294901760
        %v979 = vsub.f32 %v823, %v978
        %v980 = vand.u32 %v979, 4294901760
        %981 = vmatmul.f32.gmra.mxu0 %v980
        %v982 = vpop.f32.mrf.mxu0
        %v983 = vadd.f32 %v953, %v982
        %984 = vdwg.mxu0
        %985 = vmatpush.msra.mxu0 0.0
        %986 = vmatpush.msra.mxu0 0.0
        %987 = vmatpush.msra.mxu0 0.0
        %988 = vmatpush.msra.mxu0 0.0
        %989 = vmatpush.msra.mxu0 0.0
        %990 = vmatpush.msra.mxu0 0.0
        %991 = vmatpush.msra.mxu0 0.0
        %992 = vmatpush.msra.mxu0 0.0
        %993 = vmatpush.msra.mxu0 0.0
        %v994 = vand.u32 %v826, 4294901760
        %v995 = vsub.f32 %v826, %v994
        %v996 = vand.u32 %v995, 4294901760
        %997 = vmatpush.msra.mxu0 %v996
        %v998 = vand.u32 %v344, 4294901760
        %v999 = vsub.f32 %v344, %v998
        %v1000 = vand.u32 %v999, 4294901760
        %1001 = vmatpush.msra.mxu0 %v1000
        %v1002 = vand.u32 %v342, 4294901760
        %v1003 = vsub.f32 %v342, %v1002
        %v1004 = vand.u32 %v1003, 4294901760
        %1005 = vmatpush.msra.mxu0 %v1004
        %v1006 = vand.u32 %v340, 4294901760
        %v1007 = vsub.f32 %v340, %v1006
        %v1008 = vand.u32 %v1007, 4294901760
        %1009 = vmatpush.msra.mxu0 %v1008
        %v1010 = vand.u32 %v338, 4294901760
        %v1011 = vsub.f32 %v338, %v1010
        %v1012 = vand.u32 %v1011, 4294901760
        %1013 = vmatpush.msra.mxu0 %v1012
        %v1014 = vand.u32 %v336, 4294901760
        %v1015 = vsub.f32 %v336, %v1014
        %v1016 = vand.u32 %v1015, 4294901760
        %1017 = vmatpush.msra.mxu0 %v1016
        %v1018 = vand.u32 %v334, 4294901760
        %v1019 = vsub.f32 %v334, %v1018
        %v1020 = vand.u32 %v1019, 4294901760
        %1021 = vmatpush.msra.mxu0 %v1020
        %v1022 = vand.u32 %v823, 4294901760
        %1023 = vmatmul.f32.gmra.mxu0 %v1022
        %v1024 = vpop.f32.mrf.mxu0
        %v1025 = vadd.f32 %v983, %v1024
        %1026 = vdwg.mxu0
        %1027 = vmatpush.msra.mxu0 0.0
        %1028 = vmatpush.msra.mxu0 0.0
        %1029 = vmatpush.msra.mxu0 0.0
        %1030 = vmatpush.msra.mxu0 0.0
        %1031 = vmatpush.msra.mxu0 0.0
        %1032 = vmatpush.msra.mxu0 0.0
        %1033 = vmatpush.msra.mxu0 0.0
        %1034 = vmatpush.msra.mxu0 0.0
        %1035 = vmatpush.msra.mxu0 0.0
        %v1036 = vand.u32 %v826, 4294901760
        %1037 = vmatpush.msra.mxu0 %v1036
        %v1038 = vand.u32 %v344, 4294901760
        %1039 = vmatpush.msra.mxu0 %v1038
        %v1040 = vand.u32 %v342, 4294901760
        %1041 = vmatpush.msra.mxu0 %v1040
        %v1042 = vand.u32 %v340, 4294901760
        %1043 = vmatpush.msra.mxu0 %v1042
        %v1044 = vand.u32 %v338, 4294901760
        %1045 = vmatpush.msra.mxu0 %v1044
        %v1046 = vand.u32 %v336, 4294901760
        %1047 = vmatpush.msra.mxu0 %v1046
        %v1048 = vand.u32 %v334, 4294901760
        %1049 = vmatpush.msra.mxu0 %v1048
        %v1050 = vand.u32 %v823, 4294901760
        %1051 = vmatmul.f32.gmra.mxu0 %v1050
        %v1052 = vpop.f32.mrf.mxu0
        %v1053 = vadd.f32 %v1025, %v1052
        %1054 = vdwg.mxu0
        %1055 = vmatpush.msra.mxu0 0.0
        %1056 = vmatpush.msra.mxu0 0.0
        %1057 = vmatpush.msra.mxu0 0.0
        %1058 = vmatpush.msra.mxu0 0.0
        %1059 = vmatpush.msra.mxu0 0.0
        %1060 = vmatpush.msra.mxu0 0.0
        %1061 = vmatpush.msra.mxu0 0.0
        %1062 = vmatpush.msra.mxu0 0.0
        %1063 = vmatpush.msra.mxu0 0.0
        %v1064 = vand.u32 %v829, 4294901760
        %1065 = vmatpush.msra.mxu0 %v1064
        %v1066 = vand.u32 %v345, 4294901760
        %1067 = vmatpush.msra.mxu0 %v1066
        %v1068 = vand.u32 %v343, 4294901760
        %1069 = vmatpush.msra.mxu0 %v1068
        %v1070 = vand.u32 %v341, 4294901760
        %1071 = vmatpush.msra.mxu0 %v1070
        %v1072 = vand.u32 %v339, 4294901760
        %1073 = vmatpush.msra.mxu0 %v1072
        %v1074 = vand.u32 %v337, 4294901760
        %1075 = vmatpush.msra.mxu0 %v1074
        %v1076 = vand.u32 %v335, 4294901760
        %1077 = vmatpush.msra.mxu0 %v1076
        %v1078 = vand.u32 %v823, 4294901760
        %v1079 = vsub.f32 %v823, %v1078
        %v1080 = vand.u32 %v1079, 4294901760
        %v1081 = vsub.f32 %v1079, %v1080
        %v1082 = vand.u32 %v1081, 4294901760
        %1083 = vmatmul.f32.gmra.mxu0 %v1082
        %v1084 = vpop.f32.mrf.mxu0
        %v1085 = vadd.f32 %v820, %v1084
        %1086 = vdwg.mxu0
        %1087 = vmatpush.msra.mxu0 0.0
        %1088 = vmatpush.msra.mxu0 0.0
        %1089 = vmatpush.msra.mxu0 0.0
        %1090 = vmatpush.msra.mxu0 0.0
        %1091 = vmatpush.msra.mxu0 0.0
        %1092 = vmatpush.msra.mxu0 0.0
        %1093 = vmatpush.msra.mxu0 0.0
        %1094 = vmatpush.msra.mxu0 0.0
        %1095 = vmatpush.msra.mxu0 0.0
        %v1096 = vand.u32 %v829, 4294901760
        %v1097 = vsub.f32 %v829, %v1096
        %v1098 = vand.u32 %v1097, 4294901760
        %v1099 = vsub.f32 %v1097, %v1098
        %v1100 = vand.u32 %v1099, 4294901760
        %1101 = vmatpush.msra.mxu0 %v1100
        %v1102 = vand.u32 %v345, 4294901760
        %v1103 = vsub.f32 %v345, %v1102
        %v1104 = vand.u32 %v1103, 4294901760
        %v1105 = vsub.f32 %v1103, %v1104
        %v1106 = vand.u32 %v1105, 4294901760
        %1107 = vmatpush.msra.mxu0 %v1106
        %v1108 = vand.u32 %v343, 4294901760
        %v1109 = vsub.f32 %v343, %v1108
        %v1110 = vand.u32 %v1109, 4294901760
        %v1111 = vsub.f32 %v1109, %v1110
        %v1112 = vand.u32 %v1111, 4294901760
        %1113 = vmatpush.msra.mxu0 %v1112
        %v1114 = vand.u32 %v341, 4294901760
        %v1115 = vsub.f32 %v341, %v1114
        %v1116 = vand.u32 %v1115, 4294901760
        %v1117 = vsub.f32 %v1115, %v1116
        %v1118 = vand.u32 %v1117, 4294901760
        %1119 = vmatpush.msra.mxu0 %v1118
        %v1120 = vand.u32 %v339, 4294901760
        %v1121 = vsub.f32 %v339, %v1120
        %v1122 = vand.u32 %v1121, 4294901760
        %v1123 = vsub.f32 %v1121, %v1122
        %v1124 = vand.u32 %v1123, 4294901760
        %1125 = vmatpush.msra.mxu0 %v1124
        %v1126 = vand.u32 %v337, 4294901760
        %v1127 = vsub.f32 %v337, %v1126
        %v1128 = vand.u32 %v1127, 4294901760
        %v1129 = vsub.f32 %v1127, %v1128
        %v1130 = vand.u32 %v1129, 4294901760
        %1131 = vmatpush.msra.mxu0 %v1130
        %v1132 = vand.u32 %v335, 4294901760
        %v1133 = vsub.f32 %v335, %v1132
        %v1134 = vand.u32 %v1133, 4294901760
        %v1135 = vsub.f32 %v1133, %v1134
        %v1136 = vand.u32 %v1135, 4294901760
        %1137 = vmatpush.msra.mxu0 %v1136
        %v1138 = vand.u32 %v823, 4294901760
        %1139 = vmatmul.f32.gmra.mxu0 %v1138
        %v1140 = vpop.f32.mrf.mxu0
        %v1141 = vadd.f32 %v1085, %v1140
        %1142 = vdwg.mxu0
        %1143 = vmatpush.msra.mxu0 0.0
        %1144 = vmatpush.msra.mxu0 0.0
        %1145 = vmatpush.msra.mxu0 0.0
        %1146 = vmatpush.msra.mxu0 0.0
        %1147 = vmatpush.msra.mxu0 0.0
        %1148 = vmatpush.msra.mxu0 0.0
        %1149 = vmatpush.msra.mxu0 0.0
        %1150 = vmatpush.msra.mxu0 0.0
        %1151 = vmatpush.msra.mxu0 0.0
        %v1152 = vand.u32 %v829, 4294901760
        %v1153 = vsub.f32 %v829, %v1152
        %1154 = vmatpush.msra.mxu0 %v1153
        %v1155 = vand.u32 %v345, 4294901760
        %v1156 = vsub.f32 %v345, %v1155
        %1157 = vmatpush.msra.mxu0 %v1156
        %v1158 = vand.u32 %v343, 4294901760
        %v1159 = vsub.f32 %v343, %v1158
        %1160 = vmatpush.msra.mxu0 %v1159
        %v1161 = vand.u32 %v341, 4294901760
        %v1162 = vsub.f32 %v341, %v1161
        %1163 = vmatpush.msra.mxu0 %v1162
        %v1164 = vand.u32 %v339, 4294901760
        %v1165 = vsub.f32 %v339, %v1164
        %1166 = vmatpush.msra.mxu0 %v1165
        %v1167 = vand.u32 %v337, 4294901760
        %v1168 = vsub.f32 %v337, %v1167
        %1169 = vmatpush.msra.mxu0 %v1168
        %v1170 = vand.u32 %v335, 4294901760
        %v1171 = vsub.f32 %v335, %v1170
        %1172 = vmatpush.msra.mxu0 %v1171
        %v1173 = vand.u32 %v823, 4294901760
        %v1174 = vsub.f32 %v823, %v1173
        %1175 = vmatmul.f32.gmra.mxu0 %v1174
        %v1176 = vpop.f32.mrf.mxu0
        %v1177 = vadd.f32 %v1141, %v1176
        %1178 = vdwg.mxu0
        %1179 = vmatpush.msra.mxu0 0.0
        %1180 = vmatpush.msra.mxu0 0.0
        %1181 = vmatpush.msra.mxu0 0.0
        %1182 = vmatpush.msra.mxu0 0.0
        %1183 = vmatpush.msra.mxu0 0.0
        %1184 = vmatpush.msra.mxu0 0.0
        %1185 = vmatpush.msra.mxu0 0.0
        %1186 = vmatpush.msra.mxu0 0.0
        %1187 = vmatpush.msra.mxu0 0.0
        %v1188 = vand.u32 %v829, 4294901760
        %1189 = vmatpush.msra.mxu0 %v1188
        %v1190 = vand.u32 %v345, 4294901760
        %1191 = vmatpush.msra.mxu0 %v1190
        %v1192 = vand.u32 %v343, 4294901760
        %1193 = vmatpush.msra.mxu0 %v1192
        %v1194 = vand.u32 %v341, 4294901760
        %1195 = vmatpush.msra.mxu0 %v1194
        %v1196 = vand.u32 %v339, 4294901760
        %1197 = vmatpush.msra.mxu0 %v1196
        %v1198 = vand.u32 %v337, 4294901760
        %1199 = vmatpush.msra.mxu0 %v1198
        %v1200 = vand.u32 %v335, 4294901760
        %1201 = vmatpush.msra.mxu0 %v1200
        %v1202 = vand.u32 %v823, 4294901760
        %v1203 = vsub.f32 %v823, %v1202
        %v1204 = vand.u32 %v1203, 4294901760
        %1205 = vmatmul.f32.gmra.mxu0 %v1204
        %v1206 = vpop.f32.mrf.mxu0
        %v1207 = vadd.f32 %v1177, %v1206
        %1208 = vdwg.mxu0
        %1209 = vmatpush.msra.mxu0 0.0
        %1210 = vmatpush.msra.mxu0 0.0
        %1211 = vmatpush.msra.mxu0 0.0
        %1212 = vmatpush.msra.mxu0 0.0
        %1213 = vmatpush.msra.mxu0 0.0
        %1214 = vmatpush.msra.mxu0 0.0
        %1215 = vmatpush.msra.mxu0 0.0
        %1216 = vmatpush.msra.mxu0 0.0
        %1217 = vmatpush.msra.mxu0 0.0
        %v1218 = vand.u32 %v829, 4294901760
        %v1219 = vsub.f32 %v829, %v1218
        %v1220 = vand.u32 %v1219, 4294901760
        %1221 = vmatpush.msra.mxu0 %v1220
        %v1222 = vand.u32 %v345, 4294901760
        %v1223 = vsub.f32 %v345, %v1222
        %v1224 = vand.u32 %v1223, 4294901760
        %1225 = vmatpush.msra.mxu0 %v1224
        %v1226 = vand.u32 %v343, 4294901760
        %v1227 = vsub.f32 %v343, %v1226
        %v1228 = vand.u32 %v1227, 4294901760
        %1229 = vmatpush.msra.mxu0 %v1228
        %v1230 = vand.u32 %v341, 4294901760
        %v1231 = vsub.f32 %v341, %v1230
        %v1232 = vand.u32 %v1231, 4294901760
        %1233 = vmatpush.msra.mxu0 %v1232
        %v1234 = vand.u32 %v339, 4294901760
        %v1235 = vsub.f32 %v339, %v1234
        %v1236 = vand.u32 %v1235, 4294901760
        %1237 = vmatpush.msra.mxu0 %v1236
        %v1238 = vand.u32 %v337, 4294901760
        %v1239 = vsub.f32 %v337, %v1238
        %v1240 = vand.u32 %v1239, 4294901760
        %1241 = vmatpush.msra.mxu0 %v1240
        %v1242 = vand.u32 %v335, 4294901760
        %v1243 = vsub.f32 %v335, %v1242
        %v1244 = vand.u32 %v1243, 4294901760
        %1245 = vmatpush.msra.mxu0 %v1244
        %v1246 = vand.u32 %v823, 4294901760
        %1247 = vmatmul.f32.gmra.mxu0 %v1246
        %v1248 = vpop.f32.mrf.mxu0
        %v1249 = vadd.f32 %v1207, %v1248
        %1250 = vdwg.mxu0
        %1251 = vmatpush.msra.mxu0 0.0
        %1252 = vmatpush.msra.mxu0 0.0
        %1253 = vmatpush.msra.mxu0 0.0
        %1254 = vmatpush.msra.mxu0 0.0
        %1255 = vmatpush.msra.mxu0 0.0
        %1256 = vmatpush.msra.mxu0 0.0
        %1257 = vmatpush.msra.mxu0 0.0
        %1258 = vmatpush.msra.mxu0 0.0
        %1259 = vmatpush.msra.mxu0 0.0
        %v1260 = vand.u32 %v829, 4294901760
        %1261 = vmatpush.msra.mxu0 %v1260
        %v1262 = vand.u32 %v345, 4294901760
        %1263 = vmatpush.msra.mxu0 %v1262
        %v1264 = vand.u32 %v343, 4294901760
        %1265 = vmatpush.msra.mxu0 %v1264
        %v1266 = vand.u32 %v341, 4294901760
        %1267 = vmatpush.msra.mxu0 %v1266
        %v1268 = vand.u32 %v339, 4294901760
        %1269 = vmatpush.msra.mxu0 %v1268
        %v1270 = vand.u32 %v337, 4294901760
        %1271 = vmatpush.msra.mxu0 %v1270
        %v1272 = vand.u32 %v335, 4294901760
        %1273 = vmatpush.msra.mxu0 %v1272
        %v1274 = vand.u32 %v823, 4294901760
        %1275 = vmatmul.f32.gmra.mxu0 %v1274
        %v1276 = vpop.f32.mrf.mxu0
        %v1277 = vadd.f32 %v1249, %v1276
        %1278 = vdwg.mxu0
        %s1279 = scalar_lea.vmem [#allocation2], 224
        %v1280 = vld [vmem:[%s1279] sm:$0xff]
        %v1281 = vld [vmem:[%s1279 + $0x8] sm:$0xff]
        %v1282 = vld [vmem:[%s1279 + $0x10] sm:$0xff]
        %v1283 = vld [vmem:[%s1279 + $0x18] sm:$0xff]
        %v1284 = vld [vmem:[%s1279 + $0x20] sm:$0xff]
        %v1285 = vld [vmem:[%s1279 + $0x28] sm:$0xff]
        %v1286 = vld [vmem:[%s1279 + $0x30] sm:$0xff]
        %v1287 = vld [vmem:[%s1279 + $0x38] sm:$0xff]
        %v1288 = vld [vmem:[%s1279 + $0x40] sm:$0xff]
        %v1289 = vld [vmem:[%s1279 + $0x48] sm:$0xff]
        %v1290 = vld [vmem:[%s1279 + $0x50] sm:$0xff]
        %v1291 = vld [vmem:[%s1279 + $0x58] sm:$0xff]
        %v1292 = vld [vmem:[%s1279 + $0x60] sm:$0x1]
        %v1293 = vld [vmem:[%s1279 + $0x68] sm:$0x1]
        %v1295 = vsel %vm363, %v329, 0
        %v1298 = vsel %vm367, %v1292, 0
        %v1301 = vsel %vm367, %v1293, 0
        %1303 = vmatpush.msra.mxu0 0.0
        %1304 = vmatpush.msra.mxu0 0.0
        %1305 = vmatpush.msra.mxu0 0.0
        %1306 = vmatpush.msra.mxu0 0.0
        %1307 = vmatpush.msra.mxu0 0.0
        %1308 = vmatpush.msra.mxu0 0.0
        %1309 = vmatpush.msra.mxu0 0.0
        %1310 = vmatpush.msra.mxu0 0.0
        %1311 = vmatpush.msra.mxu0 0.0
        %v1312 = vand.u32 %v1298, 4294901760
        %1313 = vmatpush.msra.mxu0 %v1312
        %v1314 = vand.u32 %v1290, 4294901760
        %1315 = vmatpush.msra.mxu0 %v1314
        %v1316 = vand.u32 %v1288, 4294901760
        %1317 = vmatpush.msra.mxu0 %v1316
        %v1318 = vand.u32 %v1286, 4294901760
        %1319 = vmatpush.msra.mxu0 %v1318
        %v1320 = vand.u32 %v1284, 4294901760
        %1321 = vmatpush.msra.mxu0 %v1320
        %v1322 = vand.u32 %v1282, 4294901760
        %1323 = vmatpush.msra.mxu0 %v1322
        %v1324 = vand.u32 %v1280, 4294901760
        %1325 = vmatpush.msra.mxu0 %v1324
        %v1326 = vand.u32 %v1295, 4294901760
        %v1327 = vsub.f32 %v1295, %v1326
        %v1328 = vand.u32 %v1327, 4294901760
        %v1329 = vsub.f32 %v1327, %v1328
        %v1330 = vand.u32 %v1329, 4294901760
        %1331 = vmatmul.f32.gmra.mxu0 %v1330
        %v1332 = vpop.f32.mrf.mxu0
        %v1333 = vadd.f32 0.0, %v1332
        %1334 = vdwg.mxu0
        %1335 = vmatpush.msra.mxu0 0.0
        %1336 = vmatpush.msra.mxu0 0.0
        %1337 = vmatpush.msra.mxu0 0.0
        %1338 = vmatpush.msra.mxu0 0.0
        %1339 = vmatpush.msra.mxu0 0.0
        %1340 = vmatpush.msra.mxu0 0.0
        %1341 = vmatpush.msra.mxu0 0.0
        %1342 = vmatpush.msra.mxu0 0.0
        %1343 = vmatpush.msra.mxu0 0.0
        %v1344 = vand.u32 %v1298, 4294901760
        %v1345 = vsub.f32 %v1298, %v1344
        %v1346 = vand.u32 %v1345, 4294901760
        %v1347 = vsub.f32 %v1345, %v1346
        %v1348 = vand.u32 %v1347, 4294901760
        %1349 = vmatpush.msra.mxu0 %v1348
        %v1350 = vand.u32 %v1290, 4294901760
        %v1351 = vsub.f32 %v1290, %v1350
        %v1352 = vand.u32 %v1351, 4294901760
        %v1353 = vsub.f32 %v1351, %v1352
        %v1354 = vand.u32 %v1353, 4294901760
        %1355 = vmatpush.msra.mxu0 %v1354
        %v1356 = vand.u32 %v1288, 4294901760
        %v1357 = vsub.f32 %v1288, %v1356
        %v1358 = vand.u32 %v1357, 4294901760
        %v1359 = vsub.f32 %v1357, %v1358
        %v1360 = vand.u32 %v1359, 4294901760
        %1361 = vmatpush.msra.mxu0 %v1360
        %v1362 = vand.u32 %v1286, 4294901760
        %v1363 = vsub.f32 %v1286, %v1362
        %v1364 = vand.u32 %v1363, 4294901760
        %v1365 = vsub.f32 %v1363, %v1364
        %v1366 = vand.u32 %v1365, 4294901760
        %1367 = vmatpush.msra.mxu0 %v1366
        %v1368 = vand.u32 %v1284, 4294901760
        %v1369 = vsub.f32 %v1284, %v1368
        %v1370 = vand.u32 %v1369, 4294901760
        %v1371 = vsub.f32 %v1369, %v1370
        %v1372 = vand.u32 %v1371, 4294901760
        %1373 = vmatpush.msra.mxu0 %v1372
        %v1374 = vand.u32 %v1282, 4294901760
        %v1375 = vsub.f32 %v1282, %v1374
        %v1376 = vand.u32 %v1375, 4294901760
        %v1377 = vsub.f32 %v1375, %v1376
        %v1378 = vand.u32 %v1377, 4294901760
        %1379 = vmatpush.msra.mxu0 %v1378
        %v1380 = vand.u32 %v1280, 4294901760
        %v1381 = vsub.f32 %v1280, %v1380
        %v1382 = vand.u32 %v1381, 4294901760
        %v1383 = vsub.f32 %v1381, %v1382
        %v1384 = vand.u32 %v1383, 4294901760
        %1385 = vmatpush.msra.mxu0 %v1384
        %v1386 = vand.u32 %v1295, 4294901760
        %1387 = vmatmul.f32.gmra.mxu0 %v1386
        %v1388 = vpop.f32.mrf.mxu0
        %v1389 = vadd.f32 %v1333, %v1388
        %1390 = vdwg.mxu0
        %1391 = vmatpush.msra.mxu0 0.0
        %1392 = vmatpush.msra.mxu0 0.0
        %1393 = vmatpush.msra.mxu0 0.0
        %1394 = vmatpush.msra.mxu0 0.0
        %1395 = vmatpush.msra.mxu0 0.0
        %1396 = vmatpush.msra.mxu0 0.0
        %1397 = vmatpush.msra.mxu0 0.0
        %1398 = vmatpush.msra.mxu0 0.0
        %1399 = vmatpush.msra.mxu0 0.0
        %v1400 = vand.u32 %v1298, 4294901760
        %v1401 = vsub.f32 %v1298, %v1400
        %1402 = vmatpush.msra.mxu0 %v1401
        %v1403 = vand.u32 %v1290, 4294901760
        %v1404 = vsub.f32 %v1290, %v1403
        %1405 = vmatpush.msra.mxu0 %v1404
        %v1406 = vand.u32 %v1288, 4294901760
        %v1407 = vsub.f32 %v1288, %v1406
        %1408 = vmatpush.msra.mxu0 %v1407
        %v1409 = vand.u32 %v1286, 4294901760
        %v1410 = vsub.f32 %v1286, %v1409
        %1411 = vmatpush.msra.mxu0 %v1410
        %v1412 = vand.u32 %v1284, 4294901760
        %v1413 = vsub.f32 %v1284, %v1412
        %1414 = vmatpush.msra.mxu0 %v1413
        %v1415 = vand.u32 %v1282, 4294901760
        %v1416 = vsub.f32 %v1282, %v1415
        %1417 = vmatpush.msra.mxu0 %v1416
        %v1418 = vand.u32 %v1280, 4294901760
        %v1419 = vsub.f32 %v1280, %v1418
        %1420 = vmatpush.msra.mxu0 %v1419
        %v1421 = vand.u32 %v1295, 4294901760
        %v1422 = vsub.f32 %v1295, %v1421
        %1423 = vmatmul.f32.gmra.mxu0 %v1422
        %v1424 = vpop.f32.mrf.mxu0
        %v1425 = vadd.f32 %v1389, %v1424
        %1426 = vdwg.mxu0
        %1427 = vmatpush.msra.mxu0 0.0
        %1428 = vmatpush.msra.mxu0 0.0
        %1429 = vmatpush.msra.mxu0 0.0
        %1430 = vmatpush.msra.mxu0 0.0
        %1431 = vmatpush.msra.mxu0 0.0
        %1432 = vmatpush.msra.mxu0 0.0
        %1433 = vmatpush.msra.mxu0 0.0
        %1434 = vmatpush.msra.mxu0 0.0
        %1435 = vmatpush.msra.mxu0 0.0
        %v1436 = vand.u32 %v1298, 4294901760
        %1437 = vmatpush.msra.mxu0 %v1436
        %v1438 = vand.u32 %v1290, 4294901760
        %1439 = vmatpush.msra.mxu0 %v1438
        %v1440 = vand.u32 %v1288, 4294901760
        %1441 = vmatpush.msra.mxu0 %v1440
        %v1442 = vand.u32 %v1286, 4294901760
        %1443 = vmatpush.msra.mxu0 %v1442
        %v1444 = vand.u32 %v1284, 4294901760
        %1445 = vmatpush.msra.mxu0 %v1444
        %v1446 = vand.u32 %v1282, 4294901760
        %1447 = vmatpush.msra.mxu0 %v1446
        %v1448 = vand.u32 %v1280, 4294901760
        %1449 = vmatpush.msra.mxu0 %v1448
        %v1450 = vand.u32 %v1295, 4294901760
        %v1451 = vsub.f32 %v1295, %v1450
        %v1452 = vand.u32 %v1451, 4294901760
        %1453 = vmatmul.f32.gmra.mxu0 %v1452
        %v1454 = vpop.f32.mrf.mxu0
        %v1455 = vadd.f32 %v1425, %v1454
        %1456 = vdwg.mxu0
        %1457 = vmatpush.msra.mxu0 0.0
        %1458 = vmatpush.msra.mxu0 0.0
        %1459 = vmatpush.msra.mxu0 0.0
        %1460 = vmatpush.msra.mxu0 0.0
        %1461 = vmatpush.msra.mxu0 0.0
        %1462 = vmatpush.msra.mxu0 0.0
        %1463 = vmatpush.msra.mxu0 0.0
        %1464 = vmatpush.msra.mxu0 0.0
        %1465 = vmatpush.msra.mxu0 0.0
        %v1466 = vand.u32 %v1298, 4294901760
        %v1467 = vsub.f32 %v1298, %v1466
        %v1468 = vand.u32 %v1467, 4294901760
        %1469 = vmatpush.msra.mxu0 %v1468
        %v1470 = vand.u32 %v1290, 4294901760
        %v1471 = vsub.f32 %v1290, %v1470
        %v1472 = vand.u32 %v1471, 4294901760
        %1473 = vmatpush.msra.mxu0 %v1472
        %v1474 = vand.u32 %v1288, 4294901760
        %v1475 = vsub.f32 %v1288, %v1474
        %v1476 = vand.u32 %v1475, 4294901760
        %1477 = vmatpush.msra.mxu0 %v1476
        %v1478 = vand.u32 %v1286, 4294901760
        %v1479 = vsub.f32 %v1286, %v1478
        %v1480 = vand.u32 %v1479, 4294901760
        %1481 = vmatpush.msra.mxu0 %v1480
        %v1482 = vand.u32 %v1284, 4294901760
        %v1483 = vsub.f32 %v1284, %v1482
        %v1484 = vand.u32 %v1483, 4294901760
        %1485 = vmatpush.msra.mxu0 %v1484
        %v1486 = vand.u32 %v1282, 4294901760
        %v1487 = vsub.f32 %v1282, %v1486
        %v1488 = vand.u32 %v1487, 4294901760
        %1489 = vmatpush.msra.mxu0 %v1488
        %v1490 = vand.u32 %v1280, 4294901760
        %v1491 = vsub.f32 %v1280, %v1490
        %v1492 = vand.u32 %v1491, 4294901760
        %1493 = vmatpush.msra.mxu0 %v1492
        %v1494 = vand.u32 %v1295, 4294901760
        %1495 = vmatmul.f32.gmra.mxu0 %v1494
        %v1496 = vpop.f32.mrf.mxu0
        %v1497 = vadd.f32 %v1455, %v1496
        %1498 = vdwg.mxu0
        %1499 = vmatpush.msra.mxu0 0.0
        %1500 = vmatpush.msra.mxu0 0.0
        %1501 = vmatpush.msra.mxu0 0.0
        %1502 = vmatpush.msra.mxu0 0.0
        %1503 = vmatpush.msra.mxu0 0.0
        %1504 = vmatpush.msra.mxu0 0.0
        %1505 = vmatpush.msra.mxu0 0.0
        %1506 = vmatpush.msra.mxu0 0.0
        %1507 = vmatpush.msra.mxu0 0.0
        %v1508 = vand.u32 %v1298, 4294901760
        %1509 = vmatpush.msra.mxu0 %v1508
        %v1510 = vand.u32 %v1290, 4294901760
        %1511 = vmatpush.msra.mxu0 %v1510
        %v1512 = vand.u32 %v1288, 4294901760
        %1513 = vmatpush.msra.mxu0 %v1512
        %v1514 = vand.u32 %v1286, 4294901760
        %1515 = vmatpush.msra.mxu0 %v1514
        %v1516 = vand.u32 %v1284, 4294901760
        %1517 = vmatpush.msra.mxu0 %v1516
        %v1518 = vand.u32 %v1282, 4294901760
        %1519 = vmatpush.msra.mxu0 %v1518
        %v1520 = vand.u32 %v1280, 4294901760
        %1521 = vmatpush.msra.mxu0 %v1520
        %v1522 = vand.u32 %v1295, 4294901760
        %1523 = vmatmul.f32.gmra.mxu0 %v1522
        %v1524 = vpop.f32.mrf.mxu0
        %v1525 = vadd.f32 %v1497, %v1524
        %1526 = vdwg.mxu0
        %1527 = vmatpush.msra.mxu0 0.0
        %1528 = vmatpush.msra.mxu0 0.0
        %1529 = vmatpush.msra.mxu0 0.0
        %1530 = vmatpush.msra.mxu0 0.0
        %1531 = vmatpush.msra.mxu0 0.0
        %1532 = vmatpush.msra.mxu0 0.0
        %1533 = vmatpush.msra.mxu0 0.0
        %1534 = vmatpush.msra.mxu0 0.0
        %1535 = vmatpush.msra.mxu0 0.0
        %v1536 = vand.u32 %v1301, 4294901760
        %1537 = vmatpush.msra.mxu0 %v1536
        %v1538 = vand.u32 %v1291, 4294901760
        %1539 = vmatpush.msra.mxu0 %v1538
        %v1540 = vand.u32 %v1289, 4294901760
        %1541 = vmatpush.msra.mxu0 %v1540
        %v1542 = vand.u32 %v1287, 4294901760
        %1543 = vmatpush.msra.mxu0 %v1542
        %v1544 = vand.u32 %v1285, 4294901760
        %1545 = vmatpush.msra.mxu0 %v1544
        %v1546 = vand.u32 %v1283, 4294901760
        %1547 = vmatpush.msra.mxu0 %v1546
        %v1548 = vand.u32 %v1281, 4294901760
        %1549 = vmatpush.msra.mxu0 %v1548
        %v1550 = vand.u32 %v1295, 4294901760
        %v1551 = vsub.f32 %v1295, %v1550
        %v1552 = vand.u32 %v1551, 4294901760
        %v1553 = vsub.f32 %v1551, %v1552
        %v1554 = vand.u32 %v1553, 4294901760
        %1555 = vmatmul.f32.gmra.mxu0 %v1554
        %v1556 = vpop.f32.mrf.mxu0
        %v1557 = vadd.f32 0.0, %v1556
        %1558 = vdwg.mxu0
        %1559 = vmatpush.msra.mxu0 0.0
        %1560 = vmatpush.msra.mxu0 0.0
        %1561 = vmatpush.msra.mxu0 0.0
        %1562 = vmatpush.msra.mxu0 0.0
        %1563 = vmatpush.msra.mxu0 0.0
        %1564 = vmatpush.msra.mxu0 0.0
        %1565 = vmatpush.msra.mxu0 0.0
        %1566 = vmatpush.msra.mxu0 0.0
        %1567 = vmatpush.msra.mxu0 0.0
        %v1568 = vand.u32 %v1301, 4294901760
        %v1569 = vsub.f32 %v1301, %v1568
        %v1570 = vand.u32 %v1569, 4294901760
        %v1571 = vsub.f32 %v1569, %v1570
        %v1572 = vand.u32 %v1571, 4294901760
        %1573 = vmatpush.msra.mxu0 %v1572
        %v1574 = vand.u32 %v1291, 4294901760
        %v1575 = vsub.f32 %v1291, %v1574
        %v1576 = vand.u32 %v1575, 4294901760
        %v1577 = vsub.f32 %v1575, %v1576
        %v1578 = vand.u32 %v1577, 4294901760
        %1579 = vmatpush.msra.mxu0 %v1578
        %v1580 = vand.u32 %v1289, 4294901760
        %v1581 = vsub.f32 %v1289, %v1580
        %v1582 = vand.u32 %v1581, 4294901760
        %v1583 = vsub.f32 %v1581, %v1582
        %v1584 = vand.u32 %v1583, 4294901760
        %1585 = vmatpush.msra.mxu0 %v1584
        %v1586 = vand.u32 %v1287, 4294901760
        %v1587 = vsub.f32 %v1287, %v1586
        %v1588 = vand.u32 %v1587, 4294901760
        %v1589 = vsub.f32 %v1587, %v1588
        %v1590 = vand.u32 %v1589, 4294901760
        %1591 = vmatpush.msra.mxu0 %v1590
        %v1592 = vand.u32 %v1285, 4294901760
        %v1593 = vsub.f32 %v1285, %v1592
        %v1594 = vand.u32 %v1593, 4294901760
        %v1595 = vsub.f32 %v1593, %v1594
        %v1596 = vand.u32 %v1595, 4294901760
        %1597 = vmatpush.msra.mxu0 %v1596
        %v1598 = vand.u32 %v1283, 4294901760
        %v1599 = vsub.f32 %v1283, %v1598
        %v1600 = vand.u32 %v1599, 4294901760
        %v1601 = vsub.f32 %v1599, %v1600
        %v1602 = vand.u32 %v1601, 4294901760
        %1603 = vmatpush.msra.mxu0 %v1602
        %v1604 = vand.u32 %v1281, 4294901760
        %v1605 = vsub.f32 %v1281, %v1604
        %v1606 = vand.u32 %v1605, 4294901760
        %v1607 = vsub.f32 %v1605, %v1606
        %v1608 = vand.u32 %v1607, 4294901760
        %1609 = vmatpush.msra.mxu0 %v1608
        %v1610 = vand.u32 %v1295, 4294901760
        %1611 = vmatmul.f32.gmra.mxu0 %v1610
        %v1612 = vpop.f32.mrf.mxu0
        %v1613 = vadd.f32 %v1557, %v1612
        %1614 = vdwg.mxu0
        %1615 = vmatpush.msra.mxu0 0.0
        %1616 = vmatpush.msra.mxu0 0.0
        %1617 = vmatpush.msra.mxu0 0.0
        %1618 = vmatpush.msra.mxu0 0.0
        %1619 = vmatpush.msra.mxu0 0.0
        %1620 = vmatpush.msra.mxu0 0.0
        %1621 = vmatpush.msra.mxu0 0.0
        %1622 = vmatpush.msra.mxu0 0.0
        %1623 = vmatpush.msra.mxu0 0.0
        %v1624 = vand.u32 %v1301, 4294901760
        %v1625 = vsub.f32 %v1301, %v1624
        %1626 = vmatpush.msra.mxu0 %v1625
        %v1627 = vand.u32 %v1291, 4294901760
        %v1628 = vsub.f32 %v1291, %v1627
        %1629 = vmatpush.msra.mxu0 %v1628
        %v1630 = vand.u32 %v1289, 4294901760
        %v1631 = vsub.f32 %v1289, %v1630
        %1632 = vmatpush.msra.mxu0 %v1631
        %v1633 = vand.u32 %v1287, 4294901760
        %v1634 = vsub.f32 %v1287, %v1633
        %1635 = vmatpush.msra.mxu0 %v1634
        %v1636 = vand.u32 %v1285, 4294901760
        %v1637 = vsub.f32 %v1285, %v1636
        %1638 = vmatpush.msra.mxu0 %v1637
        %v1639 = vand.u32 %v1283, 4294901760
        %v1640 = vsub.f32 %v1283, %v1639
        %1641 = vmatpush.msra.mxu0 %v1640
        %v1642 = vand.u32 %v1281, 4294901760
        %v1643 = vsub.f32 %v1281, %v1642
        %1644 = vmatpush.msra.mxu0 %v1643
        %v1645 = vand.u32 %v1295, 4294901760
        %v1646 = vsub.f32 %v1295, %v1645
        %1647 = vmatmul.f32.gmra.mxu0 %v1646
        %v1648 = vpop.f32.mrf.mxu0
        %v1649 = vadd.f32 %v1613, %v1648
        %1650 = vdwg.mxu0
        %1651 = vmatpush.msra.mxu0 0.0
        %1652 = vmatpush.msra.mxu0 0.0
        %1653 = vmatpush.msra.mxu0 0.0
        %1654 = vmatpush.msra.mxu0 0.0
        %1655 = vmatpush.msra.mxu0 0.0
        %1656 = vmatpush.msra.mxu0 0.0
        %1657 = vmatpush.msra.mxu0 0.0
        %1658 = vmatpush.msra.mxu0 0.0
        %1659 = vmatpush.msra.mxu0 0.0
        %v1660 = vand.u32 %v1301, 4294901760
        %1661 = vmatpush.msra.mxu0 %v1660
        %v1662 = vand.u32 %v1291, 4294901760
        %1663 = vmatpush.msra.mxu0 %v1662
        %v1664 = vand.u32 %v1289, 4294901760
        %1665 = vmatpush.msra.mxu0 %v1664
        %v1666 = vand.u32 %v1287, 4294901760
        %1667 = vmatpush.msra.mxu0 %v1666
        %v1668 = vand.u32 %v1285, 4294901760
        %1669 = vmatpush.msra.mxu0 %v1668
        %v1670 = vand.u32 %v1283, 4294901760
        %1671 = vmatpush.msra.mxu0 %v1670
        %v1672 = vand.u32 %v1281, 4294901760
        %1673 = vmatpush.msra.mxu0 %v1672
        %v1674 = vand.u32 %v1295, 4294901760
        %v1675 = vsub.f32 %v1295, %v1674
        %v1676 = vand.u32 %v1675, 4294901760
        %1677 = vmatmul.f32.gmra.mxu0 %v1676
        %v1678 = vpop.f32.mrf.mxu0
        %v1679 = vadd.f32 %v1649, %v1678
        %1680 = vdwg.mxu0
        %1681 = vmatpush.msra.mxu0 0.0
        %1682 = vmatpush.msra.mxu0 0.0
        %1683 = vmatpush.msra.mxu0 0.0
        %1684 = vmatpush.msra.mxu0 0.0
        %1685 = vmatpush.msra.mxu0 0.0
        %1686 = vmatpush.msra.mxu0 0.0
        %1687 = vmatpush.msra.mxu0 0.0
        %1688 = vmatpush.msra.mxu0 0.0
        %1689 = vmatpush.msra.mxu0 0.0
        %v1690 = vand.u32 %v1301, 4294901760
        %v1691 = vsub.f32 %v1301, %v1690
        %v1692 = vand.u32 %v1691, 4294901760
        %1693 = vmatpush.msra.mxu0 %v1692
        %v1694 = vand.u32 %v1291, 4294901760
        %v1695 = vsub.f32 %v1291, %v1694
        %v1696 = vand.u32 %v1695, 4294901760
        %1697 = vmatpush.msra.mxu0 %v1696
        %v1698 = vand.u32 %v1289, 4294901760
        %v1699 = vsub.f32 %v1289, %v1698
        %v1700 = vand.u32 %v1699, 4294901760
        %1701 = vmatpush.msra.mxu0 %v1700
        %v1702 = vand.u32 %v1287, 4294901760
        %v1703 = vsub.f32 %v1287, %v1702
        %v1704 = vand.u32 %v1703, 4294901760
        %1705 = vmatpush.msra.mxu0 %v1704
        %v1706 = vand.u32 %v1285, 4294901760
        %v1707 = vsub.f32 %v1285, %v1706
        %v1708 = vand.u32 %v1707, 4294901760
        %1709 = vmatpush.msra.mxu0 %v1708
        %v1710 = vand.u32 %v1283, 4294901760
        %v1711 = vsub.f32 %v1283, %v1710
        %v1712 = vand.u32 %v1711, 4294901760
        %1713 = vmatpush.msra.mxu0 %v1712
        %v1714 = vand.u32 %v1281, 4294901760
        %v1715 = vsub.f32 %v1281, %v1714
        %v1716 = vand.u32 %v1715, 4294901760
        %1717 = vmatpush.msra.mxu0 %v1716
        %v1718 = vand.u32 %v1295, 4294901760
        %1719 = vmatmul.f32.gmra.mxu0 %v1718
        %v1720 = vpop.f32.mrf.mxu0
        %v1721 = vadd.f32 %v1679, %v1720
        %1722 = vdwg.mxu0
        %1723 = vmatpush.msra.mxu0 0.0
        %1724 = vmatpush.msra.mxu0 0.0
        %1725 = vmatpush.msra.mxu0 0.0
        %1726 = vmatpush.msra.mxu0 0.0
        %1727 = vmatpush.msra.mxu0 0.0
        %1728 = vmatpush.msra.mxu0 0.0
        %1729 = vmatpush.msra.mxu0 0.0
        %1730 = vmatpush.msra.mxu0 0.0
        %1731 = vmatpush.msra.mxu0 0.0
        %v1732 = vand.u32 %v1301, 4294901760
        %1733 = vmatpush.msra.mxu0 %v1732
        %v1734 = vand.u32 %v1291, 4294901760
        %1735 = vmatpush.msra.mxu0 %v1734
        %v1736 = vand.u32 %v1289, 4294901760
        %1737 = vmatpush.msra.mxu0 %v1736
        %v1738 = vand.u32 %v1287, 4294901760
        %1739 = vmatpush.msra.mxu0 %v1738
        %v1740 = vand.u32 %v1285, 4294901760
        %1741 = vmatpush.msra.mxu0 %v1740
        %v1742 = vand.u32 %v1283, 4294901760
        %1743 = vmatpush.msra.mxu0 %v1742
        %v1744 = vand.u32 %v1281, 4294901760
        %1745 = vmatpush.msra.mxu0 %v1744
        %v1746 = vand.u32 %v1295, 4294901760
        %1747 = vmatmul.f32.gmra.mxu0 %v1746
        %v1748 = vpop.f32.mrf.mxu0
        %v1749 = vadd.f32 %v1721, %v1748
        %1750 = vdwg.mxu0
        %v1751 = vadd.f32 %v1053, %v1525
        %v1752 = vadd.f32 %v1277, %v1749
        %s1753 = scalar_lea.vmem [#allocation2], 336
        %v1754 = vld [vmem:[%s1753] sm:$0xff]
        %v1755 = vld [vmem:[%s1753 + $0x8] sm:$0xff]
        %v1756 = vld [vmem:[%s1753 + $0x10] sm:$0xff]
        %v1757 = vld [vmem:[%s1753 + $0x18] sm:$0xff]
        %v1758 = vld [vmem:[%s1753 + $0x20] sm:$0xff]
        %v1759 = vld [vmem:[%s1753 + $0x28] sm:$0xff]
        %v1760 = vld [vmem:[%s1753 + $0x30] sm:$0xff]
        %v1761 = vld [vmem:[%s1753 + $0x38] sm:$0xff]
        %v1762 = vld [vmem:[%s1753 + $0x40] sm:$0xff]
        %v1763 = vld [vmem:[%s1753 + $0x48] sm:$0xff]
        %v1764 = vld [vmem:[%s1753 + $0x50] sm:$0xff]
        %v1765 = vld [vmem:[%s1753 + $0x58] sm:$0xff]
        %v1766 = vld [vmem:[%s1753 + $0x60] sm:$0x1]
        %v1767 = vld [vmem:[%s1753 + $0x68] sm:$0x1]
        %v1769 = vsel %vm363, %v332, 0
        %v1772 = vsel %vm367, %v1766, 0
        %v1775 = vsel %vm367, %v1767, 0
        %1777 = vmatpush.msra.mxu0 0.0
        %1778 = vmatpush.msra.mxu0 0.0
        %1779 = vmatpush.msra.mxu0 0.0
        %1780 = vmatpush.msra.mxu0 0.0
        %1781 = vmatpush.msra.mxu0 0.0
        %1782 = vmatpush.msra.mxu0 0.0
        %1783 = vmatpush.msra.mxu0 0.0
        %1784 = vmatpush.msra.mxu0 0.0
        %1785 = vmatpush.msra.mxu0 0.0
        %v1786 = vand.u32 %v1772, 4294901760
        %1787 = vmatpush.msra.mxu0 %v1786
        %v1788 = vand.u32 %v1764, 4294901760
        %1789 = vmatpush.msra.mxu0 %v1788
        %v1790 = vand.u32 %v1762, 4294901760
        %1791 = vmatpush.msra.mxu0 %v1790
        %v1792 = vand.u32 %v1760, 4294901760
        %1793 = vmatpush.msra.mxu0 %v1792
        %v1794 = vand.u32 %v1758, 4294901760
        %1795 = vmatpush.msra.mxu0 %v1794
        %v1796 = vand.u32 %v1756, 4294901760
        %1797 = vmatpush.msra.mxu0 %v1796
        %v1798 = vand.u32 %v1754, 4294901760
        %1799 = vmatpush.msra.mxu0 %v1798
        %v1800 = vand.u32 %v1769, 4294901760
        %v1801 = vsub.f32 %v1769, %v1800
        %v1802 = vand.u32 %v1801, 4294901760
        %v1803 = vsub.f32 %v1801, %v1802
        %v1804 = vand.u32 %v1803, 4294901760
        %1805 = vmatmul.f32.gmra.mxu0 %v1804
        %v1806 = vpop.f32.mrf.mxu0
        %v1807 = vadd.f32 0.0, %v1806
        %1808 = vdwg.mxu0
        %1809 = vmatpush.msra.mxu0 0.0
        %1810 = vmatpush.msra.mxu0 0.0
        %1811 = vmatpush.msra.mxu0 0.0
        %1812 = vmatpush.msra.mxu0 0.0
        %1813 = vmatpush.msra.mxu0 0.0
        %1814 = vmatpush.msra.mxu0 0.0
        %1815 = vmatpush.msra.mxu0 0.0
        %1816 = vmatpush.msra.mxu0 0.0
        %1817 = vmatpush.msra.mxu0 0.0
        %v1818 = vand.u32 %v1772, 4294901760
        %v1819 = vsub.f32 %v1772, %v1818
        %v1820 = vand.u32 %v1819, 4294901760
        %v1821 = vsub.f32 %v1819, %v1820
        %v1822 = vand.u32 %v1821, 4294901760
        %1823 = vmatpush.msra.mxu0 %v1822
        %v1824 = vand.u32 %v1764, 4294901760
        %v1825 = vsub.f32 %v1764, %v1824
        %v1826 = vand.u32 %v1825, 4294901760
        %v1827 = vsub.f32 %v1825, %v1826
        %v1828 = vand.u32 %v1827, 4294901760
        %1829 = vmatpush.msra.mxu0 %v1828
        %v1830 = vand.u32 %v1762, 4294901760
        %v1831 = vsub.f32 %v1762, %v1830
        %v1832 = vand.u32 %v1831, 4294901760
        %v1833 = vsub.f32 %v1831, %v1832
        %v1834 = vand.u32 %v1833, 4294901760
        %1835 = vmatpush.msra.mxu0 %v1834
        %v1836 = vand.u32 %v1760, 4294901760
        %v1837 = vsub.f32 %v1760, %v1836
        %v1838 = vand.u32 %v1837, 4294901760
        %v1839 = vsub.f32 %v1837, %v1838
        %v1840 = vand.u32 %v1839, 4294901760
        %1841 = vmatpush.msra.mxu0 %v1840
        %v1842 = vand.u32 %v1758, 4294901760
        %v1843 = vsub.f32 %v1758, %v1842
        %v1844 = vand.u32 %v1843, 4294901760
        %v1845 = vsub.f32 %v1843, %v1844
        %v1846 = vand.u32 %v1845, 4294901760
        %1847 = vmatpush.msra.mxu0 %v1846
        %v1848 = vand.u32 %v1756, 4294901760
        %v1849 = vsub.f32 %v1756, %v1848
        %v1850 = vand.u32 %v1849, 4294901760
        %v1851 = vsub.f32 %v1849, %v1850
        %v1852 = vand.u32 %v1851, 4294901760
        %1853 = vmatpush.msra.mxu0 %v1852
        %v1854 = vand.u32 %v1754, 4294901760
        %v1855 = vsub.f32 %v1754, %v1854
        %v1856 = vand.u32 %v1855, 4294901760
        %v1857 = vsub.f32 %v1855, %v1856
        %v1858 = vand.u32 %v1857, 4294901760
        %1859 = vmatpush.msra.mxu0 %v1858
        %v1860 = vand.u32 %v1769, 4294901760
        %1861 = vmatmul.f32.gmra.mxu0 %v1860
        %v1862 = vpop.f32.mrf.mxu0
        %v1863 = vadd.f32 %v1807, %v1862
        %1864 = vdwg.mxu0
        %1865 = vmatpush.msra.mxu0 0.0
        %1866 = vmatpush.msra.mxu0 0.0
        %1867 = vmatpush.msra.mxu0 0.0
        %1868 = vmatpush.msra.mxu0 0.0
        %1869 = vmatpush.msra.mxu0 0.0
        %1870 = vmatpush.msra.mxu0 0.0
        %1871 = vmatpush.msra.mxu0 0.0
        %1872 = vmatpush.msra.mxu0 0.0
        %1873 = vmatpush.msra.mxu0 0.0
        %v1874 = vand.u32 %v1772, 4294901760
        %v1875 = vsub.f32 %v1772, %v1874
        %1876 = vmatpush.msra.mxu0 %v1875
        %v1877 = vand.u32 %v1764, 4294901760
        %v1878 = vsub.f32 %v1764, %v1877
        %1879 = vmatpush.msra.mxu0 %v1878
        %v1880 = vand.u32 %v1762, 4294901760
        %v1881 = vsub.f32 %v1762, %v1880
        %1882 = vmatpush.msra.mxu0 %v1881
        %v1883 = vand.u32 %v1760, 4294901760
        %v1884 = vsub.f32 %v1760, %v1883
        %1885 = vmatpush.msra.mxu0 %v1884
        %v1886 = vand.u32 %v1758, 4294901760
        %v1887 = vsub.f32 %v1758, %v1886
        %1888 = vmatpush.msra.mxu0 %v1887
        %v1889 = vand.u32 %v1756, 4294901760
        %v1890 = vsub.f32 %v1756, %v1889
        %1891 = vmatpush.msra.mxu0 %v1890
        %v1892 = vand.u32 %v1754, 4294901760
        %v1893 = vsub.f32 %v1754, %v1892
        %1894 = vmatpush.msra.mxu0 %v1893
        %v1895 = vand.u32 %v1769, 4294901760
        %v1896 = vsub.f32 %v1769, %v1895
        %1897 = vmatmul.f32.gmra.mxu0 %v1896
        %v1898 = vpop.f32.mrf.mxu0
        %v1899 = vadd.f32 %v1863, %v1898
        %1900 = vdwg.mxu0
        %1901 = vmatpush.msra.mxu0 0.0
        %1902 = vmatpush.msra.mxu0 0.0
        %1903 = vmatpush.msra.mxu0 0.0
        %1904 = vmatpush.msra.mxu0 0.0
        %1905 = vmatpush.msra.mxu0 0.0
        %1906 = vmatpush.msra.mxu0 0.0
        %1907 = vmatpush.msra.mxu0 0.0
        %1908 = vmatpush.msra.mxu0 0.0
        %1909 = vmatpush.msra.mxu0 0.0
        %v1910 = vand.u32 %v1772, 4294901760
        %1911 = vmatpush.msra.mxu0 %v1910
        %v1912 = vand.u32 %v1764, 4294901760
        %1913 = vmatpush.msra.mxu0 %v1912
        %v1914 = vand.u32 %v1762, 4294901760
        %1915 = vmatpush.msra.mxu0 %v1914
        %v1916 = vand.u32 %v1760, 4294901760
        %1917 = vmatpush.msra.mxu0 %v1916
        %v1918 = vand.u32 %v1758, 4294901760
        %1919 = vmatpush.msra.mxu0 %v1918
        %v1920 = vand.u32 %v1756, 4294901760
        %1921 = vmatpush.msra.mxu0 %v1920
        %v1922 = vand.u32 %v1754, 4294901760
        %1923 = vmatpush.msra.mxu0 %v1922
        %v1924 = vand.u32 %v1769, 4294901760
        %v1925 = vsub.f32 %v1769, %v1924
        %v1926 = vand.u32 %v1925, 4294901760
        %1927 = vmatmul.f32.gmra.mxu0 %v1926
        %v1928 = vpop.f32.mrf.mxu0
        %v1929 = vadd.f32 %v1899, %v1928
        %1930 = vdwg.mxu0
        %1931 = vmatpush.msra.mxu0 0.0
        %1932 = vmatpush.msra.mxu0 0.0
        %1933 = vmatpush.msra.mxu0 0.0
        %1934 = vmatpush.msra.mxu0 0.0
        %1935 = vmatpush.msra.mxu0 0.0
        %1936 = vmatpush.msra.mxu0 0.0
        %1937 = vmatpush.msra.mxu0 0.0
        %1938 = vmatpush.msra.mxu0 0.0
        %1939 = vmatpush.msra.mxu0 0.0
        %v1940 = vand.u32 %v1772, 4294901760
        %v1941 = vsub.f32 %v1772, %v1940
        %v1942 = vand.u32 %v1941, 4294901760
        %1943 = vmatpush.msra.mxu0 %v1942
        %v1944 = vand.u32 %v1764, 4294901760
        %v1945 = vsub.f32 %v1764, %v1944
        %v1946 = vand.u32 %v1945, 4294901760
        %1947 = vmatpush.msra.mxu0 %v1946
        %v1948 = vand.u32 %v1762, 4294901760
        %v1949 = vsub.f32 %v1762, %v1948
        %v1950 = vand.u32 %v1949, 4294901760
        %1951 = vmatpush.msra.mxu0 %v1950
        %v1952 = vand.u32 %v1760, 4294901760
        %v1953 = vsub.f32 %v1760, %v1952
        %v1954 = vand.u32 %v1953, 4294901760
        %1955 = vmatpush.msra.mxu0 %v1954
        %v1956 = vand.u32 %v1758, 4294901760
        %v1957 = vsub.f32 %v1758, %v1956
        %v1958 = vand.u32 %v1957, 4294901760
        %1959 = vmatpush.msra.mxu0 %v1958
        %v1960 = vand.u32 %v1756, 4294901760
        %v1961 = vsub.f32 %v1756, %v1960
        %v1962 = vand.u32 %v1961, 4294901760
        %1963 = vmatpush.msra.mxu0 %v1962
        %v1964 = vand.u32 %v1754, 4294901760
        %v1965 = vsub.f32 %v1754, %v1964
        %v1966 = vand.u32 %v1965, 4294901760
        %1967 = vmatpush.msra.mxu0 %v1966
        %v1968 = vand.u32 %v1769, 4294901760
        %1969 = vmatmul.f32.gmra.mxu0 %v1968
        %v1970 = vpop.f32.mrf.mxu0
        %v1971 = vadd.f32 %v1929, %v1970
        %1972 = vdwg.mxu0
        %1973 = vmatpush.msra.mxu0 0.0
        %1974 = vmatpush.msra.mxu0 0.0
        %1975 = vmatpush.msra.mxu0 0.0
        %1976 = vmatpush.msra.mxu0 0.0
        %1977 = vmatpush.msra.mxu0 0.0
        %1978 = vmatpush.msra.mxu0 0.0
        %1979 = vmatpush.msra.mxu0 0.0
        %1980 = vmatpush.msra.mxu0 0.0
        %1981 = vmatpush.msra.mxu0 0.0
        %v1982 = vand.u32 %v1772, 4294901760
        %1983 = vmatpush.msra.mxu0 %v1982
        %v1984 = vand.u32 %v1764, 4294901760
        %1985 = vmatpush.msra.mxu0 %v1984
        %v1986 = vand.u32 %v1762, 4294901760
        %1987 = vmatpush.msra.mxu0 %v1986
        %v1988 = vand.u32 %v1760, 4294901760
        %1989 = vmatpush.msra.mxu0 %v1988
        %v1990 = vand.u32 %v1758, 4294901760
        %1991 = vmatpush.msra.mxu0 %v1990
        %v1992 = vand.u32 %v1756, 4294901760
        %1993 = vmatpush.msra.mxu0 %v1992
        %v1994 = vand.u32 %v1754, 4294901760
        %1995 = vmatpush.msra.mxu0 %v1994
        %v1996 = vand.u32 %v1769, 4294901760
        %1997 = vmatmul.f32.gmra.mxu0 %v1996
        %v1998 = vpop.f32.mrf.mxu0
        %v1999 = vadd.f32 %v1971, %v1998
        %2000 = vdwg.mxu0
        %2001 = vmatpush.msra.mxu0 0.0
        %2002 = vmatpush.msra.mxu0 0.0
        %2003 = vmatpush.msra.mxu0 0.0
        %2004 = vmatpush.msra.mxu0 0.0
        %2005 = vmatpush.msra.mxu0 0.0
        %2006 = vmatpush.msra.mxu0 0.0
        %2007 = vmatpush.msra.mxu0 0.0
        %2008 = vmatpush.msra.mxu0 0.0
        %2009 = vmatpush.msra.mxu0 0.0
        %v2010 = vand.u32 %v1775, 4294901760
        %2011 = vmatpush.msra.mxu0 %v2010
        %v2012 = vand.u32 %v1765, 4294901760
        %2013 = vmatpush.msra.mxu0 %v2012
        %v2014 = vand.u32 %v1763, 4294901760
        %2015 = vmatpush.msra.mxu0 %v2014
        %v2016 = vand.u32 %v1761, 4294901760
        %2017 = vmatpush.msra.mxu0 %v2016
        %v2018 = vand.u32 %v1759, 4294901760
        %2019 = vmatpush.msra.mxu0 %v2018
        %v2020 = vand.u32 %v1757, 4294901760
        %2021 = vmatpush.msra.mxu0 %v2020
        %v2022 = vand.u32 %v1755, 4294901760
        %2023 = vmatpush.msra.mxu0 %v2022
        %v2024 = vand.u32 %v1769, 4294901760
        %v2025 = vsub.f32 %v1769, %v2024
        %v2026 = vand.u32 %v2025, 4294901760
        %v2027 = vsub.f32 %v2025, %v2026
        %v2028 = vand.u32 %v2027, 4294901760
        %2029 = vmatmul.f32.gmra.mxu0 %v2028
        %v2030 = vpop.f32.mrf.mxu0
        %v2031 = vadd.f32 0.0, %v2030
        %2032 = vdwg.mxu0
        %2033 = vmatpush.msra.mxu0 0.0
        %2034 = vmatpush.msra.mxu0 0.0
        %2035 = vmatpush.msra.mxu0 0.0
        %2036 = vmatpush.msra.mxu0 0.0
        %2037 = vmatpush.msra.mxu0 0.0
        %2038 = vmatpush.msra.mxu0 0.0
        %2039 = vmatpush.msra.mxu0 0.0
        %2040 = vmatpush.msra.mxu0 0.0
        %2041 = vmatpush.msra.mxu0 0.0
        %v2042 = vand.u32 %v1775, 4294901760
        %v2043 = vsub.f32 %v1775, %v2042
        %v2044 = vand.u32 %v2043, 4294901760
        %v2045 = vsub.f32 %v2043, %v2044
        %v2046 = vand.u32 %v2045, 4294901760
        %2047 = vmatpush.msra.mxu0 %v2046
        %v2048 = vand.u32 %v1765, 4294901760
        %v2049 = vsub.f32 %v1765, %v2048
        %v2050 = vand.u32 %v2049, 4294901760
        %v2051 = vsub.f32 %v2049, %v2050
        %v2052 = vand.u32 %v2051, 4294901760
        %2053 = vmatpush.msra.mxu0 %v2052
        %v2054 = vand.u32 %v1763, 4294901760
        %v2055 = vsub.f32 %v1763, %v2054
        %v2056 = vand.u32 %v2055, 4294901760
        %v2057 = vsub.f32 %v2055, %v2056
        %v2058 = vand.u32 %v2057, 4294901760
        %2059 = vmatpush.msra.mxu0 %v2058
        %v2060 = vand.u32 %v1761, 4294901760
        %v2061 = vsub.f32 %v1761, %v2060
        %v2062 = vand.u32 %v2061, 4294901760
        %v2063 = vsub.f32 %v2061, %v2062
        %v2064 = vand.u32 %v2063, 4294901760
        %2065 = vmatpush.msra.mxu0 %v2064
        %v2066 = vand.u32 %v1759, 4294901760
        %v2067 = vsub.f32 %v1759, %v2066
        %v2068 = vand.u32 %v2067, 4294901760
        %v2069 = vsub.f32 %v2067, %v2068
        %v2070 = vand.u32 %v2069, 4294901760
        %2071 = vmatpush.msra.mxu0 %v2070
        %v2072 = vand.u32 %v1757, 4294901760
        %v2073 = vsub.f32 %v1757, %v2072
        %v2074 = vand.u32 %v2073, 4294901760
        %v2075 = vsub.f32 %v2073, %v2074
        %v2076 = vand.u32 %v2075, 4294901760
        %2077 = vmatpush.msra.mxu0 %v2076
        %v2078 = vand.u32 %v1755, 4294901760
        %v2079 = vsub.f32 %v1755, %v2078
        %v2080 = vand.u32 %v2079, 4294901760
        %v2081 = vsub.f32 %v2079, %v2080
        %v2082 = vand.u32 %v2081, 4294901760
        %2083 = vmatpush.msra.mxu0 %v2082
        %v2084 = vand.u32 %v1769, 4294901760
        %2085 = vmatmul.f32.gmra.mxu0 %v2084
        %v2086 = vpop.f32.mrf.mxu0
        %v2087 = vadd.f32 %v2031, %v2086
        %2088 = vdwg.mxu0
        %2089 = vmatpush.msra.mxu0 0.0
        %2090 = vmatpush.msra.mxu0 0.0
        %2091 = vmatpush.msra.mxu0 0.0
        %2092 = vmatpush.msra.mxu0 0.0
        %2093 = vmatpush.msra.mxu0 0.0
        %2094 = vmatpush.msra.mxu0 0.0
        %2095 = vmatpush.msra.mxu0 0.0
        %2096 = vmatpush.msra.mxu0 0.0
        %2097 = vmatpush.msra.mxu0 0.0
        %v2098 = vand.u32 %v1775, 4294901760
        %v2099 = vsub.f32 %v1775, %v2098
        %2100 = vmatpush.msra.mxu0 %v2099
        %v2101 = vand.u32 %v1765, 4294901760
        %v2102 = vsub.f32 %v1765, %v2101
        %2103 = vmatpush.msra.mxu0 %v2102
        %v2104 = vand.u32 %v1763, 4294901760
        %v2105 = vsub.f32 %v1763, %v2104
        %2106 = vmatpush.msra.mxu0 %v2105
        %v2107 = vand.u32 %v1761, 4294901760
        %v2108 = vsub.f32 %v1761, %v2107
        %2109 = vmatpush.msra.mxu0 %v2108
        %v2110 = vand.u32 %v1759, 4294901760
        %v2111 = vsub.f32 %v1759, %v2110
        %2112 = vmatpush.msra.mxu0 %v2111
        %v2113 = vand.u32 %v1757, 4294901760
        %v2114 = vsub.f32 %v1757, %v2113
        %2115 = vmatpush.msra.mxu0 %v2114
        %v2116 = vand.u32 %v1755, 4294901760
        %v2117 = vsub.f32 %v1755, %v2116
        %2118 = vmatpush.msra.mxu0 %v2117
        %v2119 = vand.u32 %v1769, 4294901760
        %v2120 = vsub.f32 %v1769, %v2119
        %2121 = vmatmul.f32.gmra.mxu0 %v2120
        %v2122 = vpop.f32.mrf.mxu0
        %v2123 = vadd.f32 %v2087, %v2122
        %2124 = vdwg.mxu0
        %2125 = vmatpush.msra.mxu0 0.0
        %2126 = vmatpush.msra.mxu0 0.0
        %2127 = vmatpush.msra.mxu0 0.0
        %2128 = vmatpush.msra.mxu0 0.0
        %2129 = vmatpush.msra.mxu0 0.0
        %2130 = vmatpush.msra.mxu0 0.0
        %2131 = vmatpush.msra.mxu0 0.0
        %2132 = vmatpush.msra.mxu0 0.0
        %2133 = vmatpush.msra.mxu0 0.0
        %v2134 = vand.u32 %v1775, 4294901760
        %2135 = vmatpush.msra.mxu0 %v2134
        %v2136 = vand.u32 %v1765, 4294901760
        %2137 = vmatpush.msra.mxu0 %v2136
        %v2138 = vand.u32 %v1763, 4294901760
        %2139 = vmatpush.msra.mxu0 %v2138
        %v2140 = vand.u32 %v1761, 4294901760
        %2141 = vmatpush.msra.mxu0 %v2140
        %v2142 = vand.u32 %v1759, 4294901760
        %2143 = vmatpush.msra.mxu0 %v2142
        %v2144 = vand.u32 %v1757, 4294901760
        %2145 = vmatpush.msra.mxu0 %v2144
        %v2146 = vand.u32 %v1755, 4294901760
        %2147 = vmatpush.msra.mxu0 %v2146
        %v2148 = vand.u32 %v1769, 4294901760
        %v2149 = vsub.f32 %v1769, %v2148
        %v2150 = vand.u32 %v2149, 4294901760
        %2151 = vmatmul.f32.gmra.mxu0 %v2150
        %v2152 = vpop.f32.mrf.mxu0
        %v2153 = vadd.f32 %v2123, %v2152
        %2154 = vdwg.mxu0
        %2155 = vmatpush.msra.mxu0 0.0
        %2156 = vmatpush.msra.mxu0 0.0
        %2157 = vmatpush.msra.mxu0 0.0
        %2158 = vmatpush.msra.mxu0 0.0
        %2159 = vmatpush.msra.mxu0 0.0
        %2160 = vmatpush.msra.mxu0 0.0
        %2161 = vmatpush.msra.mxu0 0.0
        %2162 = vmatpush.msra.mxu0 0.0
        %2163 = vmatpush.msra.mxu0 0.0
        %v2164 = vand.u32 %v1775, 4294901760
        %v2165 = vsub.f32 %v1775, %v2164
        %v2166 = vand.u32 %v2165, 4294901760
        %2167 = vmatpush.msra.mxu0 %v2166
        %v2168 = vand.u32 %v1765, 4294901760
        %v2169 = vsub.f32 %v1765, %v2168
        %v2170 = vand.u32 %v2169, 4294901760
        %2171 = vmatpush.msra.mxu0 %v2170
        %v2172 = vand.u32 %v1763, 4294901760
        %v2173 = vsub.f32 %v1763, %v2172
        %v2174 = vand.u32 %v2173, 4294901760
        %2175 = vmatpush.msra.mxu0 %v2174
        %v2176 = vand.u32 %v1761, 4294901760
        %v2177 = vsub.f32 %v1761, %v2176
        %v2178 = vand.u32 %v2177, 4294901760
        %2179 = vmatpush.msra.mxu0 %v2178
        %v2180 = vand.u32 %v1759, 4294901760
        %v2181 = vsub.f32 %v1759, %v2180
        %v2182 = vand.u32 %v2181, 4294901760
        %2183 = vmatpush.msra.mxu0 %v2182
        %v2184 = vand.u32 %v1757, 4294901760
        %v2185 = vsub.f32 %v1757, %v2184
        %v2186 = vand.u32 %v2185, 4294901760
        %2187 = vmatpush.msra.mxu0 %v2186
        %v2188 = vand.u32 %v1755, 4294901760
        %v2189 = vsub.f32 %v1755, %v2188
        %v2190 = vand.u32 %v2189, 4294901760
        %2191 = vmatpush.msra.mxu0 %v2190
        %v2192 = vand.u32 %v1769, 4294901760
        %2193 = vmatmul.f32.gmra.mxu0 %v2192
        %v2194 = vpop.f32.mrf.mxu0
        %v2195 = vadd.f32 %v2153, %v2194
        %2196 = vdwg.mxu0
        %2197 = vmatpush.msra.mxu0 0.0
        %2198 = vmatpush.msra.mxu0 0.0
        %2199 = vmatpush.msra.mxu0 0.0
        %2200 = vmatpush.msra.mxu0 0.0
        %2201 = vmatpush.msra.mxu0 0.0
        %2202 = vmatpush.msra.mxu0 0.0
        %2203 = vmatpush.msra.mxu0 0.0
        %2204 = vmatpush.msra.mxu0 0.0
        %2205 = vmatpush.msra.mxu0 0.0
        %v2206 = vand.u32 %v1775, 4294901760
        %2207 = vmatpush.msra.mxu0 %v2206
        %v2208 = vand.u32 %v1765, 4294901760
        %2209 = vmatpush.msra.mxu0 %v2208
        %v2210 = vand.u32 %v1763, 4294901760
        %2211 = vmatpush.msra.mxu0 %v2210
        %v2212 = vand.u32 %v1761, 4294901760
        %2213 = vmatpush.msra.mxu0 %v2212
        %v2214 = vand.u32 %v1759, 4294901760
        %2215 = vmatpush.msra.mxu0 %v2214
        %v2216 = vand.u32 %v1757, 4294901760
        %2217 = vmatpush.msra.mxu0 %v2216
        %v2218 = vand.u32 %v1755, 4294901760
        %2219 = vmatpush.msra.mxu0 %v2218
        %v2220 = vand.u32 %v1769, 4294901760
        %2221 = vmatmul.f32.gmra.mxu0 %v2220
        %v2222 = vpop.f32.mrf.mxu0
        %v2223 = vadd.f32 %v2195, %v2222
        %2224 = vdwg.mxu0
        %v2225 = vadd.f32 %v1751, %v1999
        %v2226 = vadd.f32 %v1752, %v2223
        %2227 = vst [vmem:[%s258] sm:$0xf] %v2225
        %2228 = vst [vmem:[%s258 + $0x8] sm:$0xf] %v2226
        %v2229 = vld [vmem:[%s253] sm:$0xff]
        %s2231 = scalar_lea.vmem [#allocation1], 1
        %2232 = vst [vmem:[%s2231] ss:$2 sm:$0xff] %v2229
        %v2233 = vld.sshfl [vmem:[#allocation1] sm:$0xff pattern:$0x75316420]
        %v2234 = vld.sshfl [vmem:[#allocation1 + $0x8] sm:$0xff pattern:$0x75316420]
        %2237 = vst [vmem:[%s258] sm:$0xf0] %v2233
        %2238 = vst [vmem:[%s258 + $0x8] sm:$0xf0] %v2234
        %p2239 = scmp.lt.s32.totalorder %s17, 1
        %s2240 = scalar_select %p2239, %s17, 1
        %s2241 = smul.addr %s2240, 2
        %s2242 = smul.addr %s2241, 8
        %s2243 = scalar_lea.vmem %s5, %s2242
        // Predicated region
        $region45: #{up_forward.1} parent=39 // pred_check
          %p2244 = pneg %p150
        $region46: #{up_forward.1} parent=39 // pred_check_branch
          %2246 = sbr.rel (%p2244) target = $region48
        $region47: #{up_forward.1} parent=39 // pred_region
          _
        $region48: #{up_forward.1} parent=39 // pred_fallthru
          _
      $region40: #{up_forward.1} parent=5 // pred_fallthru
        _
      %p2247 = scmp.le.s32.totalorder 2, %s12
      // Predicated region
      $region49: #{up_forward.1} parent=5 // pred_check
        %p2248 = pneg %p2247
      $region50: #{up_forward.1} parent=5 // pred_check_branch
        %2250 = sbr.rel (%p2248) target = $region52
      $region51: #{up_forward.1} parent=5 // pred_region
        %s2251 = ssub.s32 %s12, 2
        // Predicated region
        $region53: #{up_forward.1} parent=51 // pred_check
          %p2252 = pneg %p156
        $region54: #{up_forward.1} parent=51 // pred_check_branch
          %2254 = sbr.rel (%p2252) target = $region56
        $region55: #{up_forward.1} parent=51 // pred_region
          %p2255 = scmp.lt.s32.totalorder %s18, 1
          %s2256 = scalar_select %p2255, %s18, 1
          %s2257 = smul.addr %s2256, 2
          %s2258 = smul.addr %s2257, 8
          %s2259 = scalar_lea.vmem %s5, %s2258
        $region56: #{up_forward.1} parent=51 // pred_fallthru
          _
      $region52: #{up_forward.1} parent=5 // pred_fallthru
        _
    $region6: #{up_forward.1} parent=1 // loop_footer
      %s16 = sadd.s32 1, %s12
    $region7: #{up_forward.1} parent=1 // loop_footer_branch
      %11 = sbr.rel target = $region3
    $region8: #{up_forward.1} parent=1 // loop_exit
      _
    %2260 = vsyncpa [#allocation3], 1
    %s2261 = scalar_lea.sflag [#allocation3], 1
    %2262 = vsyncpa %s2261, 1

</llo_original>
